<compile_context>
chip_gen: v6e
topology: v6e:2x2x1
jax: 0.10.0
libtpu: 0.0.40
codegen_flags: <defaults>
</compile_context>

<pallas_src>
import jax
import jax.numpy as jnp
from jax import lax
from jax.experimental import pallas as pl
from jax.experimental.pallas import tpu as pltpu


# ----------------------------------- kernel -----------------------------------

def _decoder_bottleneck_kernel(x_ref, x_hbm_ref, w1_ref, w2_ref, w3_ref,
                               b1_ref, b2_ref, b3_ref,
                               o_ref, halo_x, h1s, sem):
    """One (batch, row-block) tile.  BN scales are pre-folded into the weights."""
    th_p2, W, Cw = h1s.shape                 # h1s band is kept in f32
    TH = th_p2 - 2
    Cin = x_ref.shape[-1]
    Cout = o_ref.shape[-1]
    cdt = w1_ref.dtype                       # MXU compute dtype (bf16 or f32)

    n = pl.program_id(0)
    j = pl.program_id(1)
    nj = pl.num_programs(1)
    r0 = j * TH

    # Halo DMA descriptors: built once, the SAME object is used for start and wait.
    cp_top = pltpu.make_async_copy(x_hbm_ref.at[n, r0 - 1], halo_x.at[0], sem.at[0])
    cp_bot = pltpu.make_async_copy(x_hbm_ref.at[n, r0 + TH], halo_x.at[1], sem.at[1])

    # Kick off the two 1-row halo DMAs first so they overlap the main conv1.
    @pl.when(j > 0)
    def _():
        cp_top.start()

    @pl.when(j < nj - 1)
    def _():
        cp_bot.start()

    # ---- conv1 (1x1, bn1 scale folded) + bias + relu for the TH main rows ----
    x0 = x_ref[0]                            # (TH, W, Cin)
    x2d = x0.reshape(TH * W, Cin)
    h1 = jnp.dot(x2d.astype(cdt), w1_ref[...],
                 preferred_element_type=jnp.float32)
    h1 = jnp.maximum(h1 + b1_ref[...], 0.0)
    h1s[1:TH + 1] = h1.reshape(TH, W, Cw)

    # ---- halo rows of h1: one merged (2W, Cin) x (Cin, Cw) matmul.  Image-border
    #      rows are overwritten with zeros afterwards ('SAME' zero padding). ----
    @pl.when(j > 0)
    def _():
        cp_top.wait()

    @pl.when(j < nj - 1)
    def _():
        cp_bot.wait()

    hh = jnp.dot(halo_x[...].reshape(2 * W, Cin).astype(cdt), w1_ref[...],
                 preferred_element_type=jnp.float32)
    hh = jnp.maximum(hh + b1_ref[...], 0.0).reshape(2, W, Cw)
    h1s[0] = hh[0]
    h1s[TH + 1] = hh[1]

    @pl.when(j == 0)
    def _():
        h1s[0] = jnp.zeros((W, Cw), jnp.float32)

    @pl.when(j == nj - 1)
    def _():
        h1s[TH + 1] = jnp.zeros((W, Cw), jnp.float32)

    # ---- conv2 (3x3 pad=1, bn2 scale folded) as ONE im2col matmul (K = 9*Cw) ----
    band = h1s[...]                                          # (TH+2, W, Cw) f32
    wcol = lax.broadcasted_iota(jnp.int32, band.shape, 1)
    zero = jnp.zeros_like(band)
    band_m1 = jnp.where(wcol == 0, zero, pltpu.roll(band, 1, 1))        # x[w-1]
    band_p1 = jnp.where(wcol == W - 1, zero, pltpu.roll(band, W - 1, 1))  # x[w+1]
    shifted = (band_m1, band, band_p1)                       # dx = 0, 1, 2
    patches = [shifted[dx][dy:dy + TH].astype(cdt)
               for dy in range(3) for dx in range(3)]        # (kh, kw) row-major
    im2col = jnp.concatenate(patches, axis=-1).reshape(TH * W, 9 * Cw)
    h2 = jnp.dot(im2col, w2_ref[...], preferred_element_type=jnp.float32)
    h2 = jnp.maximum(h2 + b2_ref[...], 0.0).astype(cdt)

    # ---- conv3 (1x1, bn3 scale folded) + bias + identity + relu ----
    h3 = jnp.dot(h2, w3_ref[...], preferred_element_type=jnp.float32)
    h3 = h3 + b3_ref[...]
    out = jnp.maximum(h3 + x2d.astype(jnp.float32), 0.0)     # residual add in f32
    o_ref[0] = out.reshape(TH, W, Cout).astype(o_ref.dtype)


# --------------------------------- host wrappers -------------------------------

def _round_up(v, m):
    return ((v + m - 1) // m) * m


def _vmem_capacity_bytes():
    try:
        return int(pltpu.get_tpu_info().vmem_capacity_bytes)
    except Exception:
        return 64 * 1024 * 1024               # conservative (v7x per-core VMEM)


def _per_step_vmem_bytes(th, W, cin_p, cw_p, cout_p, x_bytes, out_bytes, cdt_bytes):
    """Rough per-grid-step VMEM working set (excl. weights)."""
    blk = th * W
    fp = 2 * blk * cin_p * x_bytes            # x row block, double-buffered
    fp += 2 * blk * cout_p * out_bytes        # out row block, double-buffered
    fp += 2 * W * cin_p * x_bytes             # halo-row scratch
    fp += 3 * (th + 2) * W * cw_p * 4         # f32 h1 band + 2 shifted copies
    fp += blk * 9 * cw_p * cdt_bytes          # im2col patch matrix
    fp += blk * (2 * cw_p + 2 * cout_p) * 4   # f32 matmul outputs (h1, h2, h3/out)
    return fp


def decoder_bottleneck_forward_nhwc(x, folded, *, block_h=None):
    """x: (N, H, W, Cin) NHWC.  folded = fold_params(...).  Returns (N, H, W, Cout)."""
    w1f, w2f, w3f = folded['w1'], folded['w2'], folded['w3']
    b1, b2, b3 = folded['b1'], folded['b2'], folded['b3']
    cin, cout = folded['cin'], folded['cout']

    N, H, W, xc = x.shape
    assert xc == cin, f"expected {cin} input channels, got {xc}"
    assert cout == cin, "residual add requires inplanes == planes*expansion (scale=1)"

    cin_p, cw_p = w1f.shape
    cout_p = w3f.shape[1]
    assert cin_p == cout_p
    cdt_bytes = jnp.dtype(w1f.dtype).itemsize
    x_bytes = jnp.dtype(x.dtype).itemsize

    # Pad input channels so the residual add / output store are lane-aligned.
    if cin_p > cin:
        x = jnp.pad(x, ((0, 0), (0, 0), (0, 0), (0, cin_p - cin)))

    weight_bytes = int((w1f.size + w2f.size + w3f.size) * cdt_bytes
                       + (b1.size + b2.size + b3.size) * 4)
    vmem_cap = _vmem_capacity_bytes()

    if block_h is None:
        budget = max(4 << 20, int(0.40 * vmem_cap) - 2 * weight_bytes)
        cands = sorted({t for t in (H, H // 2, H // 4, 128, 64, 32, 16, 8, 4, 2, 1)
                        if t >= 1 and H % t == 0}, reverse=True)
        block_h = cands[-1]
        for t in cands:
            if _per_step_vmem_bytes(t, W, cin_p, cw_p, cout_p,
                                    x_bytes, x_bytes, cdt_bytes) <= budget:
                block_h = t
                break
    TH = int(block_h)
    assert H % TH == 0, "block_h must divide H"
    nH = H // TH

    vmem_need = (_per_step_vmem_bytes(TH, W, cin_p, cw_p, cout_p,
                                      x_bytes, x_bytes, cdt_bytes)
                 + 2 * weight_bytes + (2 << 20))
    vmem_limit = int(min(0.9 * vmem_cap, max(32 << 20, 1.5 * vmem_need)))

    out = pl.pallas_call(
        _decoder_bottleneck_kernel,
        out_shape=jax.ShapeDtypeStruct((N, H, W, cout_p), x.dtype),
        grid_spec=pltpu.PrefetchScalarGridSpec(
            num_scalar_prefetch=0,
            grid=(N, nH),
            in_specs=[
                # main row block of x (auto-pipelined)
                pl.BlockSpec((1, TH, W, cin_p), lambda n, j: (n, j, 0, 0)),
                # raw HBM view of x for the two 1-row halo DMAs
                pl.BlockSpec(memory_space=pl.ANY),
                # weights (BN scales folded) + biases; constant index maps
                pl.BlockSpec((cin_p, cw_p), lambda n, j: (0, 0)),
                pl.BlockSpec((9 * cw_p, cw_p), lambda n, j: (0, 0)),
                pl.BlockSpec((cw_p, cout_p), lambda n, j: (0, 0)),
                pl.BlockSpec((1, cw_p), lambda n, j: (0, 0)),
                pl.BlockSpec((1, cw_p), lambda n, j: (0, 0)),
                pl.BlockSpec((1, cout_p), lambda n, j: (0, 0)),
            ],
            out_specs=pl.BlockSpec((1, TH, W, cout_p), lambda n, j: (n, j, 0, 0)),
            scratch_shapes=[
                pltpu.VMEM((2, W, cin_p), x.dtype),           # DMA'd halo x rows
                pltpu.VMEM((TH + 2, W, cw_p), jnp.float32),   # h1 band incl. halos
                pltpu.SemaphoreType.DMA((2,)),
            ],
        ),
        compiler_params=pltpu.CompilerParams(
            dimension_semantics=("parallel", "parallel"),
            vmem_limit_bytes=vmem_limit),
    )(x, x, w1f, w2f, w3f, b1, b2, b3)

    if cout_p > cout:
        out = out[..., :cout]
    return out


def decoder_bottleneck_forward(x_nchw, folded, **kw):
    """PyTorch-layout (NCHW) convenience wrapper.
    NOTE: the transposes are full extra HBM passes — prefer the NHWC entry point."""
    x = jnp.transpose(x_nchw, (0, 2, 3, 1))
    y = decoder_bottleneck_forward_nhwc(x, folded, **kw)
    return jnp.transpose(y, (0, 3, 1, 2))


# ----------------------------- parameters / reference --------------------------

def make_params(key, inplanes, planes):
    """Synthetic parameters matching the PyTorch module (inference-mode BN stats).
    Conv weights stored in matmul layout: (Cin, Cout) and HWIO for the 3x3."""
    width = planes
    cout = planes * 4
    k = jax.random.split(key, 6)

    def normal(kk, shape):
        return jax.random.normal(kk, shape, jnp.float32)

    w1 = 0.1 * normal(k[0], (inplanes, width))
    w2 = 0.1 * normal(k[1], (3, 3, width, width))       # HWIO
    w3 = 0.1 * normal(k[2], (width, cout))

    def bn_params(kk, c):
        kg, kb, km, kv = jax.random.split(kk, 4)
        gamma = 1.0 + 0.1 * normal(kg, (c,))
        beta = 0.1 * normal(kb, (c,))
        mean = 0.1 * normal(km, (c,))
        var = jnp.abs(normal(kv, (c,))) + 0.5
        return gamma, beta, mean, var

    return dict(w1=w1, w2=w2, w3=w3,
                bn1=bn_params(k[3], width),
                bn2=bn_params(k[4], width),
                bn3=bn_params(k[5], cout))


def fold_params(params, compute_dtype=jnp.bfloat16, eps=1e-5, lane_pad=128):
    """Fold inference-mode BN scale into the conv weights, pad channels to a lane
    multiple (padded weight rows/cols and biases are zero), and reshape the 3x3
    weight to im2col layout (9*Cw, Cw) with taps in (kh, kw, cin) row-major order."""
    def fold(p):
        gamma, beta, mean, var = p
        s = gamma / jnp.sqrt(var + eps)
        return s, beta - mean * s

    s1, b1 = fold(params['bn1'])
    s2, b2 = fold(params['bn2'])
    s3, b3 = fold(params['bn3'])

    w1 = params['w1'] * s1[None, :]                      # (Cin, Cw)
    w2 = params['w2'] * s2[None, None, None, :]          # (3, 3, Cw, Cw) HWIO
    w3 = params['w3'] * s3[None, :]                      # (Cw, Cout)

    cin, cw = w1.shape
    cout = w3.shape[1]
    if lane_pad:
        cin_p = _round_up(cin, lane_pad)
        cw_p = _round_up(cw, lane_pad)
        cout_p = _round_up(cout, lane_pad)
    else:
        cin_p, cw_p, cout_p = cin, cw, cout

    w1p = jnp.zeros((cin_p, cw_p), jnp.float32).at[:cin, :cw].set(w1)
    w2p = jnp.zeros((3, 3, cw_p, cw_p), jnp.float32).at[:, :, :cw, :cw].set(w2)
    w3p = jnp.zeros((cw_p, cout_p), jnp.float32).at[:cw, :cout].set(w3)
    b1p = jnp.zeros((1, cw_p), jnp.float32).at[0, :cw].set(b1)
    b2p = jnp.zeros((1, cw_p), jnp.float32).at[0, :cw].set(b2)
    b3p = jnp.zeros((1, cout_p), jnp.float32).at[0, :cout].set(b3)

    return dict(w1=w1p.astype(compute_dtype),
                w2=w2p.reshape(9 * cw_p, cw_p).astype(compute_dtype),
                w3=w3p.astype(compute_dtype),
                b1=b1p, b2=b2p, b3=b3p,
                cin=cin, cout=cout)


def reference_forward_nhwc(x, params, eps=1e-5):
    """Plain-JAX reference of the PyTorch module (NHWC, eval-mode BN)."""
    hi = lax.Precision.HIGHEST

    def bn(h, p):
        gamma, beta, mean, var = p
        return (h - mean) * (gamma / jnp.sqrt(var + eps)) + beta

    h = jnp.einsum('nhwc,cd->nhwd', x, params['w1'], precision=hi)
    h = jnp.maximum(bn(h, params['bn1']), 0.0)
    h = lax.conv_general_dilated(h, params['w2'], (1, 1), 'SAME',
                                 dimension_numbers=('NHWC', 'HWIO', 'NHWC'),
                                 precision=hi)
    h = jnp.maximum(bn(h, params['bn2']), 0.0)
    h = jnp.einsum('nhwc,cd->nhwd', h, params['w3'], precision=hi)
    h = bn(h, params['bn3'])
    return jnp.maximum(h + x, 0.0)


if __name__ == "__main__":
    # Small shapes; inplanes == planes * expansion so the scale=1 residual is valid.
    N, INPLANES, PLANES, H, W = 2, 16, 4, 16, 16
    key = jax.random.PRNGKey(0)
    kx, kp = jax.random.split(key)

    x = jax.random.normal(kx, (N, H, W, INPLANES), jnp.float32)      # NHWC
    params = make_params(kp, INPLANES, PLANES)
    ref = reference_forward_nhwc(x, params)

    # f32 MXU path — block_h=8 gives 2 row blocks per image, exercising the halo DMAs.
    out_f32 = decoder_bottleneck_forward_nhwc(
        x, fold_params(params, jnp.float32), block_h=8)
    out_f32 = jax.block_until_ready(out_f32)
    assert out_f32.shape == (N, H, W, PLANES * 4)
    err = float(jnp.max(jnp.abs(out_f32 - ref)))
    assert err < 2e-2, f"f32 path max abs err {err}"

    # bf16 MXU path (perf default on v6e/v7x) — looser tolerance.
    folded_bf16 = fold_params(params, jnp.bfloat16)
    out_bf16 = decoder_bottleneck_forward_nhwc(x, folded_bf16, block_h=8)
    out_bf16 = jax.block_until_ready(out_bf16)
    err = float(jnp.max(jnp.abs(out_bf16 - ref)))
    assert err < 8e-2, f"bf16 path max abs err {err}"

    # VMEM-budget-aware automatic block_h path.
    out_auto = jax.block_until_ready(
        decoder_bottleneck_forward_nhwc(x, folded_bf16))
    err = float(jnp.max(jnp.abs(out_auto - ref)))
    assert err < 8e-2, f"auto block_h path max abs err {err}"

    # PyTorch-layout wrapper (shape check only; prefer NHWC in real pipelines).
    x_nchw = jnp.transpose(x, (0, 3, 1, 2))
    out_nchw = jax.block_until_ready(
        decoder_bottleneck_forward(x_nchw, folded_bf16, block_h=8))
    assert out_nchw.shape == (N, PLANES * 4, H, W)

    print("KERNEL_OK")
</pallas_src>

<mosaic_0001>
module attributes {stable_mosaic.version = 11 : i64} {
  func.func @_decoder_bottleneck_kernel(%arg0: i32, %arg1: i32, %arg2: memref<1x8x16x128xf32, #tpu.memory_space<vmem>>, %arg3: memref<2x16x16x128xf32, #tpu.memory_space<any>>, %arg4: memref<128x128xf32, #tpu.memory_space<vmem>>, %arg5: memref<1152x128xf32, #tpu.memory_space<vmem>>, %arg6: memref<128x128xf32, #tpu.memory_space<vmem>>, %arg7: memref<1x128xf32, #tpu.memory_space<vmem>>, %arg8: memref<1x128xf32, #tpu.memory_space<vmem>>, %arg9: memref<1x128xf32, #tpu.memory_space<vmem>>, %arg10: memref<1x8x16x128xf32, #tpu.memory_space<vmem>>, %arg11: memref<2x16x128xf32, #tpu.memory_space<vmem>>, %arg12: memref<10x16x128xf32, #tpu.memory_space<vmem>>, %arg13: memref<2x!tpu.dma_semaphore, #tpu.memory_space<semaphore_mem>>) attributes {dimension_semantics = [#tpu.dimension_semantics<parallel>, #tpu.dimension_semantics<parallel>], iteration_bounds = array<i64: 2, 2>, scalar_prefetch = 0 : i64, scratch_operands = 3 : i64, tpu.core_type = #tpu.core_type<tc>, window_params = [{transform_indices = @transform_0, window_bounds = array<i64: 1, 8, 16, 128>}, {}, {pipeline_mode = #tpu.pipeline_mode<synchronous>, transform_indices = @transform_2, window_bounds = array<i64: 128, 128>}, {pipeline_mode = #tpu.pipeline_mode<synchronous>, transform_indices = @transform_3, window_bounds = array<i64: 1152, 128>}, {pipeline_mode = #tpu.pipeline_mode<synchronous>, transform_indices = @transform_4, window_bounds = array<i64: 128, 128>}, {pipeline_mode = #tpu.pipeline_mode<synchronous>, transform_indices = @transform_5, window_bounds = array<i64: 1, 128>}, {pipeline_mode = #tpu.pipeline_mode<synchronous>, transform_indices = @transform_6, window_bounds = array<i64: 1, 128>}, {pipeline_mode = #tpu.pipeline_mode<synchronous>, transform_indices = @transform_7, window_bounds = array<i64: 1, 128>}, {transform_indices = @transform_8, window_bounds = array<i64: 1, 8, 16, 128>}]} {
    %c8_i32 = arith.constant 8 : i32
    %0 = arith.muli %arg1, %c8_i32 : i32
    %c1_i32 = arith.constant 1 : i32
    %1 = arith.subi %0, %c1_i32 : i32
    %c8_i32_0 = arith.constant 8 : i32
    %2 = arith.addi %0, %c8_i32_0 : i32
    %c0_i32 = arith.constant 0 : i32
    %3 = arith.cmpi sgt, %arg1, %c0_i32 : i32
    %4 = arith.extui %3 : i1 to i32
    %c0_i32_1 = arith.constant 0 : i32
    %c0_i32_2 = arith.constant 0 : i32
    %c0_i32_3 = arith.constant 0 : i32
    %5 = arith.cmpi ne, %4, %c0_i32_3 : i32
    scf.if %5 {
      %c0_i32_67 = arith.constant 0 : i32
      %c0_i32_68 = arith.constant 0 : i32
      %94 = tpu.memref_slice %arg3[%arg0, %1, %c0_i32_67, %c0_i32_68] : memref<2x16x16x128xf32, #tpu.memory_space<any>> -> memref<1x1x16x128xf32, #tpu.memory_space<any>>
      %95 = tpu.memref_squeeze %94 : memref<1x1x16x128xf32, #tpu.memory_space<any>> -> memref<16x128xf32, #tpu.memory_space<any>>
      %c0_i32_69 = arith.constant 0 : i32
      %c0_i32_70 = arith.constant 0 : i32
      %96 = tpu.memref_slice %arg11[%c0_i32_1, %c0_i32_69, %c0_i32_70] : memref<2x16x128xf32, #tpu.memory_space<vmem>> -> memref<1x16x128xf32, #tpu.memory_space<vmem>>
      %97 = tpu.memref_squeeze %96 : memref<1x16x128xf32, #tpu.memory_space<vmem>> -> memref<16x128xf32, #tpu.memory_space<vmem>>
      %98 = tpu.memref_slice %arg13[%c0_i32_2] : memref<2x!tpu.dma_semaphore, #tpu.memory_space<semaphore_mem>> -> memref<1x!tpu.dma_semaphore, #tpu.memory_space<semaphore_mem>>
      %99 = tpu.memref_squeeze %98 : memref<1x!tpu.dma_semaphore, #tpu.memory_space<semaphore_mem>> -> memref<!tpu.dma_semaphore, #tpu.memory_space<semaphore_mem>>
      tpu.enqueue_dma source(%95 : memref<16x128xf32, #tpu.memory_space<any>>) target(%97 : memref<16x128xf32, #tpu.memory_space<vmem>>) target_semaphore(%99 : memref<!tpu.dma_semaphore, #tpu.memory_space<semaphore_mem>>)
    } else {
    }
    %c1_i32_4 = arith.constant 1 : i32
    %6 = arith.cmpi slt, %arg1, %c1_i32_4 : i32
    %7 = arith.extui %6 : i1 to i32
    %c1_i32_5 = arith.constant 1 : i32
    %c1_i32_6 = arith.constant 1 : i32
    %c0_i32_7 = arith.constant 0 : i32
    %8 = arith.cmpi ne, %7, %c0_i32_7 : i32
    scf.if %8 {
      %c0_i32_67 = arith.constant 0 : i32
      %c0_i32_68 = arith.constant 0 : i32
      %94 = tpu.memref_slice %arg3[%arg0, %2, %c0_i32_67, %c0_i32_68] : memref<2x16x16x128xf32, #tpu.memory_space<any>> -> memref<1x1x16x128xf32, #tpu.memory_space<any>>
      %95 = tpu.memref_squeeze %94 : memref<1x1x16x128xf32, #tpu.memory_space<any>> -> memref<16x128xf32, #tpu.memory_space<any>>
      %c0_i32_69 = arith.constant 0 : i32
      %c0_i32_70 = arith.constant 0 : i32
      %96 = tpu.memref_slice %arg11[%c1_i32_5, %c0_i32_69, %c0_i32_70] : memref<2x16x128xf32, #tpu.memory_space<vmem>> -> memref<1x16x128xf32, #tpu.memory_space<vmem>>
      %97 = tpu.memref_squeeze %96 : memref<1x16x128xf32, #tpu.memory_space<vmem>> -> memref<16x128xf32, #tpu.memory_space<vmem>>
      %98 = tpu.memref_slice %arg13[%c1_i32_6] : memref<2x!tpu.dma_semaphore, #tpu.memory_space<semaphore_mem>> -> memref<1x!tpu.dma_semaphore, #tpu.memory_space<semaphore_mem>>
      %99 = tpu.memref_squeeze %98 : memref<1x!tpu.dma_semaphore, #tpu.memory_space<semaphore_mem>> -> memref<!tpu.dma_semaphore, #tpu.memory_space<semaphore_mem>>
      tpu.enqueue_dma source(%95 : memref<16x128xf32, #tpu.memory_space<any>>) target(%97 : memref<16x128xf32, #tpu.memory_space<vmem>>) target_semaphore(%99 : memref<!tpu.dma_semaphore, #tpu.memory_space<semaphore_mem>>)
    } else {
    }
    %c0 = arith.constant 0 : index
    %c0_8 = arith.constant 0 : index
    %c0_9 = arith.constant 0 : index
    %c0_10 = arith.constant 0 : index
    %9 = vector.load %arg2[%c0, %c0_8, %c0_9, %c0_10] : memref<1x8x16x128xf32, #tpu.memory_space<vmem>>, vector<1x8x16x128xf32>
    %10 = vector.shape_cast %9 : vector<1x8x16x128xf32> to vector<8x16x128xf32>
    %11 = vector.shape_cast %10 : vector<8x16x128xf32> to vector<128x128xf32>
    %c0_11 = arith.constant 0 : index
    %c0_12 = arith.constant 0 : index
    %12 = vector.load %arg4[%c0_11, %c0_12] : memref<128x128xf32, #tpu.memory_space<vmem>>, vector<128x128xf32>
    %cst = arith.constant dense<0.000000e+00> : vector<128x128xf32>
    %13 = tpu.matmul %11, %12, %cst {dimension_numbers = #tpu.dot_dimension_numbers<[1], [0], [0], [1], [0, 0, 1, 1], [], []>} : vector<128x128xf32>, vector<128x128xf32>, vector<128x128xf32> -> vector<128x128xf32>
    %c0_13 = arith.constant 0 : index
    %c0_14 = arith.constant 0 : index
    %14 = vector.load %arg7[%c0_13, %c0_14] : memref<1x128xf32, #tpu.memory_space<vmem>>, vector<1x128xf32>
    %15 = vector.broadcast %14 : vector<1x128xf32> to vector<128x128xf32>
    %16 = arith.addf %13, %15 : vector<128x128xf32>
    %cst_15 = arith.constant 0.000000e+00 : f32
    %17 = vector.broadcast %cst_15 : f32 to vector<128x128xf32>
    %18 = arith.maximumf %16, %17 : vector<128x128xf32>
    %19 = vector.shape_cast %18 : vector<128x128xf32> to vector<8x16x128xf32>
    %c1 = arith.constant 1 : index
    %c0_16 = arith.constant 0 : index
    %c0_17 = arith.constant 0 : index
    %20 = vector.load %arg12[%c1, %c0_16, %c0_17] : memref<10x16x128xf32, #tpu.memory_space<vmem>>, vector<8x16x128xf32>
    tpu.vector_store %arg12[%c1, %c0_16, %c0_17], %19 {strides = array<i32>} : memref<10x16x128xf32, #tpu.memory_space<vmem>>, vector<8x16x128xf32>,
    %c0_i32_18 = arith.constant 0 : i32
    %21 = arith.cmpi sgt, %arg1, %c0_i32_18 : i32
    %22 = arith.extui %21 : i1 to i32
    %c0_i32_19 = arith.constant 0 : i32
    %c0_i32_20 = arith.constant 0 : i32
    %c0_i32_21 = arith.constant 0 : i32
    %23 = arith.cmpi ne, %22, %c0_i32_21 : i32
    scf.if %23 {
      %c0_i32_67 = arith.constant 0 : i32
      %c0_i32_68 = arith.constant 0 : i32
      %94 = tpu.memref_slice %arg3[%arg0, %1, %c0_i32_67, %c0_i32_68] : memref<2x16x16x128xf32, #tpu.memory_space<any>> -> memref<1x1x16x128xf32, #tpu.memory_space<any>>
      %95 = tpu.memref_squeeze %94 : memref<1x1x16x128xf32, #tpu.memory_space<any>> -> memref<16x128xf32, #tpu.memory_space<any>>
      %c0_i32_69 = arith.constant 0 : i32
      %c0_i32_70 = arith.constant 0 : i32
      %96 = tpu.memref_slice %arg11[%c0_i32_19, %c0_i32_69, %c0_i32_70] : memref<2x16x128xf32, #tpu.memory_space<vmem>> -> memref<1x16x128xf32, #tpu.memory_space<vmem>>
      %97 = tpu.memref_squeeze %96 : memref<1x16x128xf32, #tpu.memory_space<vmem>> -> memref<16x128xf32, #tpu.memory_space<vmem>>
      %98 = tpu.memref_slice %arg13[%c0_i32_20] : memref<2x!tpu.dma_semaphore, #tpu.memory_space<semaphore_mem>> -> memref<1x!tpu.dma_semaphore, #tpu.memory_space<semaphore_mem>>
      %99 = tpu.memref_squeeze %98 : memref<1x!tpu.dma_semaphore, #tpu.memory_space<semaphore_mem>> -> memref<!tpu.dma_semaphore, #tpu.memory_space<semaphore_mem>>
      tpu.wait_dma2 semaphore(%99 : memref<!tpu.dma_semaphore, #tpu.memory_space<semaphore_mem>>) src(%95 : memref<16x128xf32, #tpu.memory_space<any>>) dst(%97 : memref<16x128xf32, #tpu.memory_space<vmem>>)
    } else {
    }
    %c1_i32_22 = arith.constant 1 : i32
    %24 = arith.cmpi slt, %arg1, %c1_i32_22 : i32
    %25 = arith.extui %24 : i1 to i32
    %c1_i32_23 = arith.constant 1 : i32
    %c1_i32_24 = arith.constant 1 : i32
    %c0_i32_25 = arith.constant 0 : i32
    %26 = arith.cmpi ne, %25, %c0_i32_25 : i32
    scf.if %26 {
      %c0_i32_67 = arith.constant 0 : i32
      %c0_i32_68 = arith.constant 0 : i32
      %94 = tpu.memref_slice %arg3[%arg0, %2, %c0_i32_67, %c0_i32_68] : memref<2x16x16x128xf32, #tpu.memory_space<any>> -> memref<1x1x16x128xf32, #tpu.memory_space<any>>
      %95 = tpu.memref_squeeze %94 : memref<1x1x16x128xf32, #tpu.memory_space<any>> -> memref<16x128xf32, #tpu.memory_space<any>>
      %c0_i32_69 = arith.constant 0 : i32
      %c0_i32_70 = arith.constant 0 : i32
      %96 = tpu.memref_slice %arg11[%c1_i32_23, %c0_i32_69, %c0_i32_70] : memref<2x16x128xf32, #tpu.memory_space<vmem>> -> memref<1x16x128xf32, #tpu.memory_space<vmem>>
      %97 = tpu.memref_squeeze %96 : memref<1x16x128xf32, #tpu.memory_space<vmem>> -> memref<16x128xf32, #tpu.memory_space<vmem>>
      %98 = tpu.memref_slice %arg13[%c1_i32_24] : memref<2x!tpu.dma_semaphore, #tpu.memory_space<semaphore_mem>> -> memref<1x!tpu.dma_semaphore, #tpu.memory_space<semaphore_mem>>
      %99 = tpu.memref_squeeze %98 : memref<1x!tpu.dma_semaphore, #tpu.memory_space<semaphore_mem>> -> memref<!tpu.dma_semaphore, #tpu.memory_space<semaphore_mem>>
      tpu.wait_dma2 semaphore(%99 : memref<!tpu.dma_semaphore, #tpu.memory_space<semaphore_mem>>) src(%95 : memref<16x128xf32, #tpu.memory_space<any>>) dst(%97 : memref<16x128xf32, #tpu.memory_space<vmem>>)
    } else {
    }
    %c0_26 = arith.constant 0 : index
    %c0_27 = arith.constant 0 : index
    %c0_28 = arith.constant 0 : index
    %27 = vector.load %arg11[%c0_26, %c0_27, %c0_28] : memref<2x16x128xf32, #tpu.memory_space<vmem>>, vector<2x16x128xf32>
    %28 = vector.shape_cast %27 : vector<2x16x128xf32> to vector<32x128xf32>
    %c0_29 = arith.constant 0 : index
    %c0_30 = arith.constant 0 : index
    %29 = vector.load %arg4[%c0_29, %c0_30] : memref<128x128xf32, #tpu.memory_space<vmem>>, vector<128x128xf32>
    %cst_31 = arith.constant dense<0.000000e+00> : vector<32x128xf32>
    %30 = tpu.matmul %28, %29, %cst_31 {dimension_numbers = #tpu.dot_dimension_numbers<[1], [0], [0], [1], [0, 0, 1, 1], [], []>} : vector<32x128xf32>, vector<128x128xf32>, vector<32x128xf32> -> vector<32x128xf32>
    %c0_32 = arith.constant 0 : index
    %c0_33 = arith.constant 0 : index
    %31 = vector.load %arg7[%c0_32, %c0_33] : memref<1x128xf32, #tpu.memory_space<vmem>>, vector<1x128xf32>
    %32 = vector.broadcast %31 : vector<1x128xf32> to vector<32x128xf32>
    %33 = arith.addf %30, %32 : vector<32x128xf32>
    %cst_34 = arith.constant 0.000000e+00 : f32
    %34 = vector.broadcast %cst_34 : f32 to vector<32x128xf32>
    %35 = arith.maximumf %33, %34 : vector<32x128xf32>
    %36 = vector.shape_cast %35 : vector<32x128xf32> to vector<2x16x128xf32>
    %37 = vector.extract_strided_slice %36 {offsets = [0, 0, 0], sizes = [1, 16, 128], strides = [1, 1, 1]} : vector<2x16x128xf32> to vector<1x16x128xf32>
    %38 = vector.shape_cast %37 : vector<1x16x128xf32> to vector<16x128xf32>
    %c0_35 = arith.constant 0 : index
    %c0_36 = arith.constant 0 : index
    %c0_37 = arith.constant 0 : index
    %39 = vector.load %arg12[%c0_35, %c0_36, %c0_37] : memref<10x16x128xf32, #tpu.memory_space<vmem>>, vector<1x16x128xf32>
    %40 = vector.shape_cast %39 : vector<1x16x128xf32> to vector<16x128xf32>
    %41 = vector.shape_cast %38 : vector<16x128xf32> to vector<1x16x128xf32>
    tpu.vector_store %arg12[%c0_35, %c0_36, %c0_37], %41 {strides = array<i32>} : memref<10x16x128xf32, #tpu.memory_space<vmem>>, vector<1x16x128xf32>,
    %42 = vector.extract_strided_slice %36 {offsets = [1, 0, 0], sizes = [1, 16, 128], strides = [1, 1, 1]} : vector<2x16x128xf32> to vector<1x16x128xf32>
    %43 = vector.shape_cast %42 : vector<1x16x128xf32> to vector<16x128xf32>
    %c9 = arith.constant 9 : index
    %c0_38 = arith.constant 0 : index
    %c0_39 = arith.constant 0 : index
    %44 = vector.load %arg12[%c9, %c0_38, %c0_39] : memref<10x16x128xf32, #tpu.memory_space<vmem>>, vector<1x16x128xf32>
    %45 = vector.shape_cast %44 : vector<1x16x128xf32> to vector<16x128xf32>
    %46 = vector.shape_cast %43 : vector<16x128xf32> to vector<1x16x128xf32>
    tpu.vector_store %arg12[%c9, %c0_38, %c0_39], %46 {strides = array<i32>} : memref<10x16x128xf32, #tpu.memory_space<vmem>>, vector<1x16x128xf32>,
    %c0_i32_40 = arith.constant 0 : i32
    %47 = arith.cmpi eq, %arg1, %c0_i32_40 : i32
    %48 = arith.extui %47 : i1 to i32
    %c0_i32_41 = arith.constant 0 : i32
    %49 = arith.cmpi ne, %48, %c0_i32_41 : i32
    scf.if %49 {
      %cst_67 = arith.constant 0.000000e+00 : f32
      %94 = vector.broadcast %cst_67 : f32 to vector<16x128xf32>
      %c0_68 = arith.constant 0 : index
      %c0_69 = arith.constant 0 : index
      %c0_70 = arith.constant 0 : index
      %95 = vector.load %arg12[%c0_68, %c0_69, %c0_70] : memref<10x16x128xf32, #tpu.memory_space<vmem>>, vector<1x16x128xf32>
      %96 = vector.shape_cast %95 : vector<1x16x128xf32> to vector<16x128xf32>
      %97 = vector.shape_cast %94 : vector<16x128xf32> to vector<1x16x128xf32>
      tpu.vector_store %arg12[%c0_68, %c0_69, %c0_70], %97 {strides = array<i32>} : memref<10x16x128xf32, #tpu.memory_space<vmem>>, vector<1x16x128xf32>,
    } else {
    }
    %c1_i32_42 = arith.constant 1 : i32
    %50 = arith.cmpi eq, %arg1, %c1_i32_42 : i32
    %51 = arith.extui %50 : i1 to i32
    %c0_i32_43 = arith.constant 0 : i32
    %52 = arith.cmpi ne, %51, %c0_i32_43 : i32
    scf.if %52 {
      %cst_67 = arith.constant 0.000000e+00 : f32
      %94 = vector.broadcast %cst_67 : f32 to vector<16x128xf32>
      %c9_68 = arith.constant 9 : index
      %c0_69 = arith.constant 0 : index
      %c0_70 = arith.constant 0 : index
      %95 = vector.load %arg12[%c9_68, %c0_69, %c0_70] : memref<10x16x128xf32, #tpu.memory_space<vmem>>, vector<1x16x128xf32>
      %96 = vector.shape_cast %95 : vector<1x16x128xf32> to vector<16x128xf32>
      %97 = vector.shape_cast %94 : vector<16x128xf32> to vector<1x16x128xf32>
      tpu.vector_store %arg12[%c9_68, %c0_69, %c0_70], %97 {strides = array<i32>} : memref<10x16x128xf32, #tpu.memory_space<vmem>>, vector<1x16x128xf32>,
    } else {
    }
    %c0_44 = arith.constant 0 : index
    %c0_45 = arith.constant 0 : index
    %c0_46 = arith.constant 0 : index
    %53 = vector.load %arg12[%c0_44, %c0_45, %c0_46] : memref<10x16x128xf32, #tpu.memory_space<vmem>>, vector<10x16x128xf32>
    %54 = tpu.iota {dimensions = array<i32: 1>} : vector<10x16x128xi32>
    %cst_47 = arith.constant 0.000000e+00 : f32
    %55 = vector.broadcast %cst_47 : f32 to vector<10x16x128xf32>
    %c0_i32_48 = arith.constant 0 : i32
    %56 = vector.broadcast %c0_i32_48 : i32 to vector<10x16x128xi32>
    %57 = arith.cmpi eq, %54, %56 : vector<10x16x128xi32>
    %c1_i32_49 = arith.constant 1 : i32
    %58 = tpu.dynamic_rotate %53 by %c1_i32_49 dim 1 : vector<10x16x128xf32>, i32 -> vector<10x16x128xf32>
    %59 = arith.select %57, %55, %58 : vector<10x16x128xi1>, vector<10x16x128xf32>
    %c15_i32 = arith.constant 15 : i32
    %60 = vector.broadcast %c15_i32 : i32 to vector<10x16x128xi32>
    %61 = arith.cmpi eq, %54, %60 : vector<10x16x128xi32>
    %c15_i32_50 = arith.constant 15 : i32
    %62 = tpu.dynamic_rotate %53 by %c15_i32_50 dim 1 : vector<10x16x128xf32>, i32 -> vector<10x16x128xf32>
    %63 = arith.select %61, %55, %62 : vector<10x16x128xi1>, vector<10x16x128xf32>
    %64 = vector.extract_strided_slice %59 {offsets = [0, 0, 0], sizes = [8, 16, 128], strides = [1, 1, 1]} : vector<10x16x128xf32> to vector<8x16x128xf32>
    %65 = vector.extract_strided_slice %53 {offsets = [0, 0, 0], sizes = [8, 16, 128], strides = [1, 1, 1]} : vector<10x16x128xf32> to vector<8x16x128xf32>
    %66 = vector.extract_strided_slice %63 {offsets = [0, 0, 0], sizes = [8, 16, 128], strides = [1, 1, 1]} : vector<10x16x128xf32> to vector<8x16x128xf32>
    %67 = vector.extract_strided_slice %59 {offsets = [1, 0, 0], sizes = [8, 16, 128], strides = [1, 1, 1]} : vector<10x16x128xf32> to vector<8x16x128xf32>
    %68 = vector.extract_strided_slice %53 {offsets = [1, 0, 0], sizes = [8, 16, 128], strides = [1, 1, 1]} : vector<10x16x128xf32> to vector<8x16x128xf32>
    %69 = vector.extract_strided_slice %63 {offsets = [1, 0, 0], sizes = [8, 16, 128], strides = [1, 1, 1]} : vector<10x16x128xf32> to vector<8x16x128xf32>
    %70 = vector.extract_strided_slice %59 {offsets = [2, 0, 0], sizes = [8, 16, 128], strides = [1, 1, 1]} : vector<10x16x128xf32> to vector<8x16x128xf32>
    %71 = vector.extract_strided_slice %53 {offsets = [2, 0, 0], sizes = [8, 16, 128], strides = [1, 1, 1]} : vector<10x16x128xf32> to vector<8x16x128xf32>
    %72 = vector.extract_strided_slice %63 {offsets = [2, 0, 0], sizes = [8, 16, 128], strides = [1, 1, 1]} : vector<10x16x128xf32> to vector<8x16x128xf32>
    %73 = tpu.concatenate %64, %65, %66, %67, %68, %69, %70, %71, %72 in 2 : vector<8x16x128xf32>, vector<8x16x128xf32>, vector<8x16x128xf32>, vector<8x16x128xf32>, vector<8x16x128xf32>, vector<8x16x128xf32>, vector<8x16x128xf32>, vector<8x16x128xf32>, vector<8x16x128xf32> -> vector<8x16x1152xf32>
    %74 = vector.shape_cast %73 : vector<8x16x1152xf32> to vector<128x1152xf32>
    %c0_51 = arith.constant 0 : index
    %c0_52 = arith.constant 0 : index
    %75 = vector.load %arg5[%c0_51, %c0_52] : memref<1152x128xf32, #tpu.memory_space<vmem>>, vector<1152x128xf32>
    %cst_53 = arith.constant dense<0.000000e+00> : vector<128x128xf32>
    %76 = tpu.matmul %74, %75, %cst_53 {dimension_numbers = #tpu.dot_dimension_numbers<[1], [0], [0], [1], [0, 0, 1, 1], [], []>} : vector<128x1152xf32>, vector<1152x128xf32>, vector<128x128xf32> -> vector<128x128xf32>
    %c0_54 = arith.constant 0 : index
    %c0_55 = arith.constant 0 : index
    %77 = vector.load %arg8[%c0_54, %c0_55] : memref<1x128xf32, #tpu.memory_space<vmem>>, vector<1x128xf32>
    %78 = vector.broadcast %77 : vector<1x128xf32> to vector<128x128xf32>
    %79 = arith.addf %76, %78 : vector<128x128xf32>
    %cst_56 = arith.constant 0.000000e+00 : f32
    %80 = vector.broadcast %cst_56 : f32 to vector<128x128xf32>
    %81 = arith.maximumf %79, %80 : vector<128x128xf32>
    %c0_57 = arith.constant 0 : index
    %c0_58 = arith.constant 0 : index
    %82 = vector.load %arg6[%c0_57, %c0_58] : memref<128x128xf32, #tpu.memory_space<vmem>>, vector<128x128xf32>
    %cst_59 = arith.constant dense<0.000000e+00> : vector<128x128xf32>
    %83 = tpu.matmul %81, %82, %cst_59 {dimension_numbers = #tpu.dot_dimension_numbers<[1], [0], [0], [1], [0, 0, 1, 1], [], []>} : vector<128x128xf32>, vector<128x128xf32>, vector<128x128xf32> -> vector<128x128xf32>
    %c0_60 = arith.constant 0 : index
    %c0_61 = arith.constant 0 : index
    %84 = vector.load %arg9[%c0_60, %c0_61] : memref<1x128xf32, #tpu.memory_space<vmem>>, vector<1x128xf32>
    %85 = vector.broadcast %84 : vector<1x128xf32> to vector<128x128xf32>
    %86 = arith.addf %83, %85 : vector<128x128xf32>
    %87 = arith.addf %86, %11 : vector<128x128xf32>
    %cst_62 = arith.constant 0.000000e+00 : f32
    %88 = vector.broadcast %cst_62 : f32 to vector<128x128xf32>
    %89 = arith.maximumf %87, %88 : vector<128x128xf32>
    %90 = vector.shape_cast %89 : vector<128x128xf32> to vector<8x16x128xf32>
    %c0_63 = arith.constant 0 : index
    %c0_64 = arith.constant 0 : index
    %c0_65 = arith.constant 0 : index
    %c0_66 = arith.constant 0 : index
    %91 = vector.load %arg10[%c0_63, %c0_64, %c0_65, %c0_66] : memref<1x8x16x128xf32, #tpu.memory_space<vmem>>, vector<1x8x16x128xf32>
    %92 = vector.shape_cast %91 : vector<1x8x16x128xf32> to vector<8x16x128xf32>
    %93 = vector.shape_cast %90 : vector<8x16x128xf32> to vector<1x8x16x128xf32>
    tpu.vector_store %arg10[%c0_63, %c0_64, %c0_65, %c0_66], %93 {strides = array<i32>} : memref<1x8x16x128xf32, #tpu.memory_space<vmem>>, vector<1x8x16x128xf32>,
    return
  }
  func.func @transform_0(%arg0: i32, %arg1: i32) -> (i32, i32, i32, i32) {
    %c0_i32 = arith.constant 0 : i32
    %c0_i32_0 = arith.constant 0 : i32
    %c0_i32_1 = arith.constant 0 : i32
    return %arg0, %arg1, %c0_i32, %c0_i32_0 : i32, i32, i32, i32
  }
  func.func @transform_2(%arg0: i32, %arg1: i32) -> (i32, i32) {
    %c0_i32 = arith.constant 0 : i32
    %c0_i32_0 = arith.constant 0 : i32
    %c0_i32_1 = arith.constant 0 : i32
    return %c0_i32, %c0_i32_0 : i32, i32
  }
  func.func @transform_3(%arg0: i32, %arg1: i32) -> (i32, i32) {
    %c0_i32 = arith.constant 0 : i32
    %c0_i32_0 = arith.constant 0 : i32
    %c0_i32_1 = arith.constant 0 : i32
    return %c0_i32, %c0_i32_0 : i32, i32
  }
  func.func @transform_4(%arg0: i32, %arg1: i32) -> (i32, i32) {
    %c0_i32 = arith.constant 0 : i32
    %c0_i32_0 = arith.constant 0 : i32
    %c0_i32_1 = arith.constant 0 : i32
    return %c0_i32, %c0_i32_0 : i32, i32
  }
  func.func @transform_5(%arg0: i32, %arg1: i32) -> (i32, i32) {
    %c0_i32 = arith.constant 0 : i32
    %c0_i32_0 = arith.constant 0 : i32
    %c0_i32_1 = arith.constant 0 : i32
    return %c0_i32, %c0_i32_0 : i32, i32
  }
  func.func @transform_6(%arg0: i32, %arg1: i32) -> (i32, i32) {
    %c0_i32 = arith.constant 0 : i32
    %c0_i32_0 = arith.constant 0 : i32
    %c0_i32_1 = arith.constant 0 : i32
    return %c0_i32, %c0_i32_0 : i32, i32
  }
  func.func @transform_7(%arg0: i32, %arg1: i32) -> (i32, i32) {
    %c0_i32 = arith.constant 0 : i32
    %c0_i32_0 = arith.constant 0 : i32
    %c0_i32_1 = arith.constant 0 : i32
    return %c0_i32, %c0_i32_0 : i32, i32
  }
  func.func @transform_8(%arg0: i32, %arg1: i32) -> (i32, i32, i32, i32) {
    %c0_i32 = arith.constant 0 : i32
    %c0_i32_0 = arith.constant 0 : i32
    %c0_i32_1 = arith.constant 0 : i32
    return %arg0, %arg1, %c0_i32, %c0_i32_0 : i32, i32, i32, i32
  }
}

</mosaic_0001>

<llo_original>
// kernel: tpu_custom_call.1
$region0: #{tpu_custom_call.1}
  #allocation0 [shape = 'u32[]', space=smem, size = 0x4, offset = 0x4, fixed_abs, tag = 'smem constant byte address 0x4 - core index']
  #allocation1 [shape = 'u32[144,128]{1,0:T(1,128)}', space=vmem, size = 0x12000, scoped, tag = 'internal scratch']
  #allocation2 [shape = 'f32[2,16,128]{2,1,0:T(8,128)}', space=vmem, size = 0x4000, scoped, tag = 'scratch operand']
  #allocation3 [shape = 'f32[10,16,128]{2,1,0:T(8,128)}', space=vmem, size = 0x14000, scoped, tag = 'scratch operand']
  #allocation4 [shape = 's32[2]{0}', space=sflag, size = 0x8, scoped, tag = 'scratch operand']
  #allocation14 [shape = 's32[]', space=sflag, size = 0x4, offset = 0, fixed_abs, tag = 'sflag constant byte address 0x0 - dummy sync flag']
  #allocation15 [shape = 's32[]', space=sflag, size = 0x4, offset = 0, fixed_abs, tag = 'sflag constant byte address 0x0 - dummy sync flag']
  #allocation16 [shape = 'u32[]', space=smem, size = 0x4, offset = 0x44, fixed_abs, tag = 'smem constant byte address 0x44 - assertion arg 0']
  #allocation17 [shape = 'u32[]', space=smem, size = 0x4, offset = 0x48, fixed_abs, tag = 'smem constant byte address 0x48 - assertion arg 1']
  #allocation18 [shape = 's32[]', space=sflag, size = 0x4, offset = 0, fixed_abs, tag = 'sflag constant byte address 0x0 - dummy sync flag']
  #allocation19 [shape = 's32[]', space=sflag, size = 0x4, offset = 0, fixed_abs, tag = 'sflag constant byte address 0x0 - dummy sync flag']
  %s0 = inlined_call_operand.hbm [shape: f32[2,16,16,128], index: 0, kind: input, shape index: {}]
  %s1 = inlined_call_operand.hbm [shape: f32[2,16,16,128], index: 1, kind: input, shape index: {}]
  %s2 = inlined_call_operand.hbm [shape: f32[128,128], index: 2, kind: input, shape index: {}]
  %s3 = inlined_call_operand.hbm [shape: f32[1152,128], index: 3, kind: input, shape index: {}]
  %s4 = inlined_call_operand.hbm [shape: f32[128,128], index: 4, kind: input, shape index: {}]
  %s5 = inlined_call_operand.vmem [shape: f32[1,128], index: 5, kind: input, shape index: {}]
  %s6 = inlined_call_operand.vmem [shape: f32[1,128], index: 6, kind: input, shape index: {}]
  %s7 = inlined_call_operand.vmem [shape: f32[1,128], index: 7, kind: input, shape index: {}]
  %s8 = inlined_call_operand.hbm [shape: f32[2,16,16,128], index: 8, kind: output, shape index: {}]
  %s9 = sld [smem:[#allocation0]]
  $region109: #{tpu_custom_call.1} parent=0
    _
  %s11 = ssub.s32 1, %s9
  %s12 = scalar_select 0, %s11, %s9
  $region1: #{tpu_custom_call.1} parent=0
    #allocation5 [shape = 'u8[131072]{0}', space=vmem, size = 0x20000, scoped, tag = 'input window, operand 0']
    #allocation6 [shape = 's32[2]{0}', space=sflag, size = 0x8, scoped, tag = 'scoped memory for tpu_custom_call.1']
    #allocation7 [shape = 's32[2]{0}', space=sflag, size = 0x8, scoped, tag = 'scoped memory for tpu_custom_call.1']
    #allocation8 [shape = 'u8[65536]{0}', space=vmem, size = 0x10000, scoped, tag = 'input window, operand 2, single buffered']
    #allocation9 [shape = 's32[1]{0}', space=sflag, size = 0x4, scoped, tag = 'scoped memory for tpu_custom_call.1']
    #allocation10 [shape = 'u8[589824]{0}', space=vmem, size = 0x90000, scoped, tag = 'input window, operand 3, single buffered']
    #allocation11 [shape = 'u8[65536]{0}', space=vmem, size = 0x10000, scoped, tag = 'input window, operand 4, single buffered']
    #allocation12 [shape = 's32[1]{0}', space=sflag, size = 0x4, scoped, tag = 'scoped memory for tpu_custom_call.1']
    #allocation13 [shape = 'u8[131072]{0}', space=vmem, size = 0x20000, scoped, tag = 'output window, operand 0']
    %13 = vsyncpa [#allocation6], 0
    %s14 = scalar_lea.sflag [#allocation6], 1
    %15 = vsyncpa %s14, 0
    %16 = vsyncpa [#allocation9], 0
    %17 = vsyncpa [#allocation12], 0
    %18 = vsyncpa [#allocation7], 0
    %s19 = scalar_lea.sflag [#allocation7], 1
    %20 = vsyncpa %s19, 0
    loop: start=0, step=1, limit=6
    $region2: #{tpu_custom_call.1} parent=1 // loop_pre_header
      _
    $region3: #{tpu_custom_call.1} parent=1 // loop_header
      %s22 = sphi 0, %s26
      %p23 = scmp.ge.s32.totalorder %s22, 6
      %s29 = sphi 0, %s41
      %s30 = sphi 0, %s37
      %s31 = sphi 0, %s29
      %s32 = sphi 0, %s30
      %s33 = sphi 0, %s31
      %s34 = sphi 0, %s32
      %s46 = sphi 0, %s48
      %s49 = sphi 0, %s46
      %s50 = sphi 0, %s49
      %s66 = sphi 0, %s50
      %s70 = sphi 0, %s70
      %s72 = sphi 0, %s70
      %s73 = sphi 0, %s72
      %s87 = sphi 0, %s73
      %s91 = sphi 0, %s91
      %s93 = sphi 0, %s91
      %s94 = sphi 0, %s93
      %s108 = sphi 0, %s94
      %s112 = sphi 0, %s112
      %s114 = sphi 0, %s112
      %s115 = sphi 0, %s114
      %s129 = sphi 0, %s115
      %s133 = sphi 0, %s133
      %s135 = sphi 0, %s133
      %s136 = sphi 0, %s135
      %s150 = sphi 0, %s136
      %s154 = sphi 0, %s154
      %s156 = sphi 0, %s154
      %s157 = sphi 0, %s156
      %s171 = sphi 0, %s157
      %s175 = sphi 0, %s175
      %s177 = sphi 0, %s175
      %s178 = sphi 0, %s177
      %s192 = sphi 0, %s178
      %s200 = sphi 0, %s202
      %s203 = sphi 0, %s200
      %s204 = sphi 0, %s203
      %s220 = sphi 0, %s204
    $region4: #{tpu_custom_call.1} parent=1 // loop_header_branch
      %25 = sbr.rel (%p23) target = $region8
    $region5: #{tpu_custom_call.1} parent=1 // loop_body
      %s27 = ssub.s32 %s22, 1
      %s28 = ssub.s32 %s22, 2
      %s35 = sadd.s32 1, %s30
      %p36 = scmp.ge.s32.totalorder %s35, 2
      %s37 = scalar_select %p36, 0, %s35
      %s38 = sadd.s32 1, %s29
      %s39 = scalar_select %p36, %s38, %s29
      %p40 = scmp.ge.s32.totalorder %s39, 2
      %s41 = scalar_select %p40, 0, %s39
      %s42 = ssub.s32 %s29, %s41
      %s43 = ssub.s32 %s30, %s37
      %s44 = sor.u32 %s42, %s43
      %p45 = scmp.eq.s32.totalorder %s44, 0
      %s47 = sadd.s32 %s46, 1
      %s48 = scalar_select %p45, %s46, %s47
      %p51 = pneg %p45
      %p52 = scmp.eq.s32.totalorder %s22, 3
      %p53 = por %p51, %p52
      %p54 = scmp.ne.s32.totalorder %s46, %s49
      %p55 = scmp.eq.s32.totalorder %s22, 0
      %p56 = por %p54, %p55
      %p57 = scmp.ne.s32.totalorder %s46, %s49
      %p58 = scmp.eq.s32.totalorder %s27, 3
      %p59 = por %p57, %p58
      %p60 = scmp.ne.s32.totalorder %s49, %s50
      %p61 = scmp.eq.s32.totalorder %s27, 0
      %p62 = por %p60, %p61
      %p63 = scmp.ne.s32.totalorder %s49, %s50
      %p64 = scmp.eq.s32.totalorder %s28, 3
      %p65 = por %p63, %p64
      %p67 = scmp.ne.s32.totalorder %s50, %s66
      %p68 = scmp.eq.s32.totalorder %s28, 0
      %p69 = por %p67, %p68
      %s71 = sadd.s32 %s70, 1
      %p74 = scmp.eq.s32.totalorder %s22, 3
      %p75 = scmp.ne.s32.totalorder %s70, %s72
      %p76 = scmp.eq.s32.totalorder %s22, 0
      %p77 = por %p75, %p76
      %p78 = scmp.ne.s32.totalorder %s70, %s72
      %p79 = scmp.eq.s32.totalorder %s27, 3
      %p80 = por %p78, %p79
      %p81 = scmp.ne.s32.totalorder %s72, %s73
      %p82 = scmp.eq.s32.totalorder %s27, 0
      %p83 = por %p81, %p82
      %p84 = scmp.ne.s32.totalorder %s72, %s73
      %p85 = scmp.eq.s32.totalorder %s28, 3
      %p86 = por %p84, %p85
      %p88 = scmp.ne.s32.totalorder %s73, %s87
      %p89 = scmp.eq.s32.totalorder %s28, 0
      %p90 = por %p88, %p89
      %s92 = sadd.s32 %s91, 1
      %p95 = scmp.eq.s32.totalorder %s22, 3
      %p96 = scmp.ne.s32.totalorder %s91, %s93
      %p97 = scmp.eq.s32.totalorder %s22, 0
      %p98 = por %p96, %p97
      %p99 = scmp.ne.s32.totalorder %s91, %s93
      %p100 = scmp.eq.s32.totalorder %s27, 3
      %p101 = por %p99, %p100
      %p102 = scmp.ne.s32.totalorder %s93, %s94
      %p103 = scmp.eq.s32.totalorder %s27, 0
      %p104 = por %p102, %p103
      %p105 = scmp.ne.s32.totalorder %s93, %s94
      %p106 = scmp.eq.s32.totalorder %s28, 3
      %p107 = por %p105, %p106
      %p109 = scmp.ne.s32.totalorder %s94, %s108
      %p110 = scmp.eq.s32.totalorder %s28, 0
      %p111 = por %p109, %p110
      %s113 = sadd.s32 %s112, 1
      %p116 = scmp.eq.s32.totalorder %s22, 3
      %p117 = scmp.ne.s32.totalorder %s112, %s114
      %p118 = scmp.eq.s32.totalorder %s22, 0
      %p119 = por %p117, %p118
      %p120 = scmp.ne.s32.totalorder %s112, %s114
      %p121 = scmp.eq.s32.totalorder %s27, 3
      %p122 = por %p120, %p121
      %p123 = scmp.ne.s32.totalorder %s114, %s115
      %p124 = scmp.eq.s32.totalorder %s27, 0
      %p125 = por %p123, %p124
      %p126 = scmp.ne.s32.totalorder %s114, %s115
      %p127 = scmp.eq.s32.totalorder %s28, 3
      %p128 = por %p126, %p127
      %p130 = scmp.ne.s32.totalorder %s115, %s129
      %p131 = scmp.eq.s32.totalorder %s28, 0
      %p132 = por %p130, %p131
      %s134 = sadd.s32 %s133, 1
      %p137 = scmp.eq.s32.totalorder %s22, 3
      %p138 = scmp.ne.s32.totalorder %s133, %s135
      %p139 = scmp.eq.s32.totalorder %s22, 0
      %p140 = por %p138, %p139
      %p141 = scmp.ne.s32.totalorder %s133, %s135
      %p142 = scmp.eq.s32.totalorder %s27, 3
      %p143 = por %p141, %p142
      %p144 = scmp.ne.s32.totalorder %s135, %s136
      %p145 = scmp.eq.s32.totalorder %s27, 0
      %p146 = por %p144, %p145
      %p147 = scmp.ne.s32.totalorder %s135, %s136
      %p148 = scmp.eq.s32.totalorder %s28, 3
      %p149 = por %p147, %p148
      %p151 = scmp.ne.s32.totalorder %s136, %s150
      %p152 = scmp.eq.s32.totalorder %s28, 0
      %p153 = por %p151, %p152
      %s155 = sadd.s32 %s154, 1
      %p158 = scmp.eq.s32.totalorder %s22, 3
      %p159 = scmp.ne.s32.totalorder %s154, %s156
      %p160 = scmp.eq.s32.totalorder %s22, 0
      %p161 = por %p159, %p160
      %p162 = scmp.ne.s32.totalorder %s154, %s156
      %p163 = scmp.eq.s32.totalorder %s27, 3
      %p164 = por %p162, %p163
      %p165 = scmp.ne.s32.totalorder %s156, %s157
      %p166 = scmp.eq.s32.totalorder %s27, 0
      %p167 = por %p165, %p166
      %p168 = scmp.ne.s32.totalorder %s156, %s157
      %p169 = scmp.eq.s32.totalorder %s28, 3
      %p170 = por %p168, %p169
      %p172 = scmp.ne.s32.totalorder %s157, %s171
      %p173 = scmp.eq.s32.totalorder %s28, 0
      %p174 = por %p172, %p173
      %s176 = sadd.s32 %s175, 1
      %p179 = scmp.eq.s32.totalorder %s22, 3
      %p180 = scmp.ne.s32.totalorder %s175, %s177
      %p181 = scmp.eq.s32.totalorder %s22, 0
      %p182 = por %p180, %p181
      %p183 = scmp.ne.s32.totalorder %s175, %s177
      %p184 = scmp.eq.s32.totalorder %s27, 3
      %p185 = por %p183, %p184
      %p186 = scmp.ne.s32.totalorder %s177, %s178
      %p187 = scmp.eq.s32.totalorder %s27, 0
      %p188 = por %p186, %p187
      %p189 = scmp.ne.s32.totalorder %s177, %s178
      %p190 = scmp.eq.s32.totalorder %s28, 3
      %p191 = por %p189, %p190
      %p193 = scmp.ne.s32.totalorder %s178, %s192
      %p194 = scmp.eq.s32.totalorder %s28, 0
      %p195 = por %p193, %p194
      %s196 = ssub.s32 %s29, %s41
      %s197 = ssub.s32 %s30, %s37
      %s198 = sor.u32 %s196, %s197
      %p199 = scmp.eq.s32.totalorder %s198, 0
      %s201 = sadd.s32 %s200, 1
      %s202 = scalar_select %p199, %s200, %s201
      %p205 = pneg %p199
      %p206 = scmp.eq.s32.totalorder %s22, 3
      %p207 = por %p205, %p206
      %p208 = scmp.ne.s32.totalorder %s200, %s203
      %p209 = scmp.eq.s32.totalorder %s22, 0
      %p210 = por %p208, %p209
      %p211 = scmp.ne.s32.totalorder %s200, %s203
      %p212 = scmp.eq.s32.totalorder %s27, 3
      %p213 = por %p211, %p212
      %p214 = scmp.ne.s32.totalorder %s203, %s204
      %p215 = scmp.eq.s32.totalorder %s27, 0
      %p216 = por %p214, %p215
      %p217 = scmp.ne.s32.totalorder %s203, %s204
      %p218 = scmp.eq.s32.totalorder %s28, 3
      %p219 = por %p217, %p218
      %p221 = scmp.ne.s32.totalorder %s204, %s220
      %p222 = scmp.eq.s32.totalorder %s28, 0
      %p223 = por %p221, %p222
      %p224 = scmp.le.s32.totalorder 1, %s22
      %p225 = scmp.lt.s32.totalorder %s22, 5
      %p226 = pnand %p224, %p225
      %p227 = pneg %p226
      // Predicated region
      $region9: #{tpu_custom_call.1} parent=5 // pred_check
        _
      $region10: #{tpu_custom_call.1} parent=5 // pred_check_branch
        %229 = sbr.rel (%p226) target = $region12
      $region11: #{tpu_custom_call.1} parent=5 // pred_region
        %s230 = ssub.s32 %s22, 1
        // Predicated region
        $region13: #{tpu_custom_call.1} parent=11 // pred_check
          %p231 = pneg %p83
        $region14: #{tpu_custom_call.1} parent=11 // pred_check_branch
          %233 = sbr.rel (%p231) target = $region16
        $region15: #{tpu_custom_call.1} parent=11 // pred_region
          %s235 = ssub.s32 2048, 2048
          %236 = vsyncadd [#allocation9], %s235
          %s237 = sshll.u32 [#allocation8], 4
          %s238 = int_to_ptr.vmem [resolvable:$true] %s237
          %243 = dma.hbm_to_vmem [thread:$0]  %s2, 2048, %s238, [#allocation9], 128, 128, 8
        $region16: #{tpu_custom_call.1} parent=11 // pred_fallthru
          _
        // Predicated region
        $region17: #{tpu_custom_call.1} parent=11 // pred_check
          %p244 = pneg %p104
        $region18: #{tpu_custom_call.1} parent=11 // pred_check_branch
          %246 = sbr.rel (%p244) target = $region20
        $region19: #{tpu_custom_call.1} parent=11 // pred_region
          %s248 = ssub.s32 18432, 18432
          %249 = vsyncadd [#allocation9], %s248
          %s250 = sshll.u32 [#allocation10], 4
          %s251 = int_to_ptr.vmem [resolvable:$true] %s250
          %256 = dma.hbm_to_vmem [thread:$0]  %s3, 18432, %s251, [#allocation9], 128, 128, 8
        $region20: #{tpu_custom_call.1} parent=11 // pred_fallthru
          _
        // Predicated region
        $region21: #{tpu_custom_call.1} parent=11 // pred_check
          %p257 = pneg %p125
        $region22: #{tpu_custom_call.1} parent=11 // pred_check_branch
          %259 = sbr.rel (%p257) target = $region24
        $region23: #{tpu_custom_call.1} parent=11 // pred_region
          %s261 = ssub.s32 2048, 2048
          %262 = vsyncadd [#allocation12], %s261
          %s263 = sshll.u32 [#allocation11], 4
          %s264 = int_to_ptr.vmem [resolvable:$true] %s263
          %269 = dma.hbm_to_vmem [thread:$0]  %s4, 2048, %s264, [#allocation12], 128, 128, 8
        $region24: #{tpu_custom_call.1} parent=11 // pred_fallthru
          _
        // Predicated region
        $region25: #{tpu_custom_call.1} parent=11 // pred_check
          %p270 = pneg %p146
        $region26: #{tpu_custom_call.1} parent=11 // pred_check_branch
          %272 = sbr.rel (%p270) target = $region28
        $region27: #{tpu_custom_call.1} parent=11 // pred_region
          _
        $region28: #{tpu_custom_call.1} parent=11 // pred_fallthru
          _
        // Predicated region
        $region29: #{tpu_custom_call.1} parent=11 // pred_check
          %p273 = pneg %p167
        $region30: #{tpu_custom_call.1} parent=11 // pred_check_branch
          %275 = sbr.rel (%p273) target = $region32
        $region31: #{tpu_custom_call.1} parent=11 // pred_region
          _
        $region32: #{tpu_custom_call.1} parent=11 // pred_fallthru
          _
        // Predicated region
        $region33: #{tpu_custom_call.1} parent=11 // pred_check
          %p276 = pneg %p188
        $region34: #{tpu_custom_call.1} parent=11 // pred_check_branch
          %278 = sbr.rel (%p276) target = $region36
        $region35: #{tpu_custom_call.1} parent=11 // pred_region
          _
        $region36: #{tpu_custom_call.1} parent=11 // pred_fallthru
          _
      $region12: #{tpu_custom_call.1} parent=5 // pred_fallthru
        _
      %p279 = scmp.lt.s32.totalorder %s22, 4
      // Predicated region
      $region37: #{tpu_custom_call.1} parent=5 // pred_check
        %p280 = pneg %p279
      $region38: #{tpu_custom_call.1} parent=5 // pred_check_branch
        %282 = sbr.rel (%p280) target = $region40
      $region39: #{tpu_custom_call.1} parent=5 // pred_region
        // Predicated region
        $region41: #{tpu_custom_call.1} parent=39 // pred_check
          %p283 = pneg %p56
        $region42: #{tpu_custom_call.1} parent=39 // pred_check_branch
          %285 = sbr.rel (%p283) target = $region44
        $region43: #{tpu_custom_call.1} parent=39 // pred_region
          %s286 = sand.u32 %s46, 1
          %s287 = scalar_lea.sflag [#allocation6], %s286
          %s288 = sand.u32 %s46, 1
          %s289 = smul.addr %s288, 128
          %s290 = scalar_lea.vmem [#allocation5], %s289
          %s291 = smul.u32 8, %s30
          %s293 = ssub.s32 2048, 2048
          %294 = vsyncadd %s287, %s293
          %s295 = smul.addr %s291, 2
          %s296 = smul.addr %s29, 32
          %s297 = sadd.s32 %s295, %s296
          %s298 = smul.addr %s297, 128
          %s299 = scalar_lea.hbm %s0, %s298
          %s300 = sshll.u32 %s290, 4
          %s301 = int_to_ptr.vmem [resolvable:$true] %s300
          %306 = dma.hbm_to_vmem [thread:$0]  %s299, 2048, %s301, %s287, 128, 128, 8
        $region44: #{tpu_custom_call.1} parent=39 // pred_fallthru
          _
      $region40: #{tpu_custom_call.1} parent=5 // pred_fallthru
        _
      %p307 = scmp.le.s32.totalorder 1, %s22
      %p308 = scmp.lt.s32.totalorder %s22, 5
      %p309 = pnand %p307, %p308
      %p310 = pneg %p309
      // Predicated region
      $region45: #{tpu_custom_call.1} parent=5 // pred_check
        _
      $region46: #{tpu_custom_call.1} parent=5 // pred_check_branch
        %312 = sbr.rel (%p309) target = $region48
      $region47: #{tpu_custom_call.1} parent=5 // pred_region
        %s313 = ssub.s32 %s22, 1
        %s314 = sand.u32 %s49, 1
        %s315 = scalar_lea.sflag [#allocation6], %s314
        %s316 = sand.u32 %s49, 1
        %s317 = smul.addr %s316, 128
        %s318 = scalar_lea.vmem [#allocation5], %s317
        // Predicated region
        $region49: #{tpu_custom_call.1} parent=47 // pred_check
          %p319 = pneg %p62
        $region50: #{tpu_custom_call.1} parent=47 // pred_check_branch
          %321 = sbr.rel (%p319) target = $region52
        $region51: #{tpu_custom_call.1} parent=47 // pred_region
          %322 = dma.done %s315, 2048
        $region52: #{tpu_custom_call.1} parent=47 // pred_fallthru
          _
        // Predicated region
        $region53: #{tpu_custom_call.1} parent=47 // pred_check
          %p323 = pneg %p83
        $region54: #{tpu_custom_call.1} parent=47 // pred_check_branch
          %325 = sbr.rel (%p323) target = $region56
        $region55: #{tpu_custom_call.1} parent=47 // pred_region
          %326 = dma.done [#allocation9], 2048
        $region56: #{tpu_custom_call.1} parent=47 // pred_fallthru
          _
        // Predicated region
        $region57: #{tpu_custom_call.1} parent=47 // pred_check
          %p327 = pneg %p104
        $region58: #{tpu_custom_call.1} parent=47 // pred_check_branch
          %329 = sbr.rel (%p327) target = $region60
        $region59: #{tpu_custom_call.1} parent=47 // pred_region
          %330 = dma.done [#allocation9], 18432
        $region60: #{tpu_custom_call.1} parent=47 // pred_fallthru
          _
        // Predicated region
        $region61: #{tpu_custom_call.1} parent=47 // pred_check
          %p331 = pneg %p125
        $region62: #{tpu_custom_call.1} parent=47 // pred_check_branch
          %333 = sbr.rel (%p331) target = $region64
        $region63: #{tpu_custom_call.1} parent=47 // pred_region
          %334 = dma.done [#allocation12], 2048
        $region64: #{tpu_custom_call.1} parent=47 // pred_fallthru
          _
        %s335 = sand.u32 %s49, 1
        %s336 = scalar_lea.sflag [#allocation6], %s335
        %s337 = sand.u32 %s49, 1
        %s338 = smul.addr %s337, 128
        %s339 = scalar_lea.vmem [#allocation5], %s338
        %p340 = pneg %p62
        %p341 = pneg %p59
        %p342 = pneg %p83
        %p343 = pneg %p80
        %p344 = pneg %p104
        %p345 = pneg %p101
        %p346 = pneg %p125
        %p347 = pneg %p122
        %p348 = pneg %p146
        %p349 = pneg %p143
        %p350 = pneg %p167
        %p351 = pneg %p164
        %p352 = pneg %p188
        %p353 = pneg %p185
        %p354 = pneg %p216
        %p355 = pneg %p213
        %s356 = sand.u32 %s203, 1
        %s357 = scalar_lea.sflag [#allocation7], %s356
        %s358 = sand.u32 %s203, 1
        %s359 = smul.addr %s358, 128
        %s360 = scalar_lea.vmem [#allocation13], %s359
        %s361 = smul.u32 8, %s32
        %s362 = smul.u32 8, %s32
        %s363 = smul.u32 %s32, 8
        %s364 = ssub.s32 %s363, 1
        %s365 = sadd.s32 %s363, 8
        %p366 = scmp.gt.s32.totalorder %s32, 0
        // Predicated region
        $region65: #{tpu_custom_call.1} parent=47 // pred_check
          %p367 = pneg %p366
        $region66: #{tpu_custom_call.1} parent=47 // pred_check_branch
          %369 = sbr.rel (%p367) target = $region68
        $region67: #{tpu_custom_call.1} parent=47 // pred_region
          %s370 = smul.u32 %s364, 16
          %s371 = smul.u32 %s31, 256
          %s372 = sadd.s32 %s370, %s371
          %s373 = smul.addr %s372, 16
          %s374 = scalar_lea.hbm %s1, %s373
          // Predicated region
          $region69: #{tpu_custom_call.1} parent=67 // pred_check
            _
          $region70: #{tpu_custom_call.1} parent=67 // pred_check_branch
            %376 = sbr.rel target = $region72
          $region71: #{tpu_custom_call.1} parent=67 // pred_region
            %377 = sst [smem:[#allocation16]] [#allocation15]
            %378 = sst [smem:[#allocation17]] [#allocation14]
          $region72: #{tpu_custom_call.1} parent=67 // pred_fallthru
            _
          %380 = shalt.err (0)
          %s382 = sshll.u32 [#allocation2], 4
          %s383 = int_to_ptr.vmem [resolvable:$true] %s382
          %385 = dma.hbm_to_vmem [thread:$0]  %s374, 256, %s383, [#allocation4]
        $region68: #{tpu_custom_call.1} parent=47 // pred_fallthru
          _
        %p386 = scmp.lt.s32.totalorder %s32, 1
        // Predicated region
        $region73: #{tpu_custom_call.1} parent=47 // pred_check
          %p387 = pneg %p386
        $region74: #{tpu_custom_call.1} parent=47 // pred_check_branch
          %389 = sbr.rel (%p387) target = $region76
        $region75: #{tpu_custom_call.1} parent=47 // pred_region
          %s390 = smul.u32 %s365, 16
          %s391 = smul.u32 %s31, 256
          %s392 = sadd.s32 %s390, %s391
          %s393 = smul.addr %s392, 16
          %s394 = scalar_lea.hbm %s1, %s393
          %s395 = scalar_lea.vmem [#allocation2], 16
          %s396 = scalar_lea.sflag [#allocation4], 1
          // Predicated region
          $region77: #{tpu_custom_call.1} parent=75 // pred_check
            _
          $region78: #{tpu_custom_call.1} parent=75 // pred_check_branch
            %398 = sbr.rel target = $region80
          $region79: #{tpu_custom_call.1} parent=75 // pred_region
            %399 = sst [smem:[#allocation16]] [#allocation19]
            %400 = sst [smem:[#allocation17]] [#allocation18]
          $region80: #{tpu_custom_call.1} parent=75 // pred_fallthru
            _
          %402 = shalt.err (0)
          %s404 = sshll.u32 %s395, 4
          %s405 = int_to_ptr.vmem [resolvable:$true] %s404
          %407 = dma.hbm_to_vmem [thread:$0]  %s394, 256, %s405, %s396
        $region76: #{tpu_custom_call.1} parent=47 // pred_fallthru
          _
        %v408 = vld [vmem:[%s318] sm:$0xff]
        %v409 = vld [vmem:[%s318 + $0x8] sm:$0xff]
        %v410 = vld [vmem:[%s318 + $0x10] sm:$0xff]
        %v411 = vld [vmem:[%s318 + $0x18] sm:$0xff]
        %v412 = vld [vmem:[%s318 + $0x20] sm:$0xff]
        %v413 = vld [vmem:[%s318 + $0x28] sm:$0xff]
        %v414 = vld [vmem:[%s318 + $0x30] sm:$0xff]
        %v415 = vld [vmem:[%s318 + $0x38] sm:$0xff]
        %v416 = vld [vmem:[%s318 + $0x40] sm:$0xff]
        %v417 = vld [vmem:[%s318 + $0x48] sm:$0xff]
        %v418 = vld [vmem:[%s318 + $0x50] sm:$0xff]
        %v419 = vld [vmem:[%s318 + $0x58] sm:$0xff]
        %v420 = vld [vmem:[%s318 + $0x60] sm:$0xff]
        %v421 = vld [vmem:[%s318 + $0x68] sm:$0xff]
        %v422 = vld [vmem:[%s318 + $0x70] sm:$0xff]
        %v423 = vld [vmem:[%s318 + $0x78] sm:$0xff]
        %v424 = vld [vmem:[#allocation8] sm:$0xff]
        %v425 = vld [vmem:[#allocation8 + $0x8] sm:$0xff]
        %v426 = vld [vmem:[#allocation8 + $0x10] sm:$0xff]
        %v427 = vld [vmem:[#allocation8 + $0x18] sm:$0xff]
        %v428 = vld [vmem:[#allocation8 + $0x20] sm:$0xff]
        %v429 = vld [vmem:[#allocation8 + $0x28] sm:$0xff]
        %v430 = vld [vmem:[#allocation8 + $0x30] sm:$0xff]
        %v431 = vld [vmem:[#allocation8 + $0x38] sm:$0xff]
        %v432 = vld [vmem:[#allocation8 + $0x40] sm:$0xff]
        %v433 = vld [vmem:[#allocation8 + $0x48] sm:$0xff]
        %v434 = vld [vmem:[#allocation8 + $0x50] sm:$0xff]
        %v435 = vld [vmem:[#allocation8 + $0x58] sm:$0xff]
        %v436 = vld [vmem:[#allocation8 + $0x60] sm:$0xff]
        %v437 = vld [vmem:[#allocation8 + $0x68] sm:$0xff]
        %v438 = vld [vmem:[#allocation8 + $0x70] sm:$0xff]
        %v439 = vld [vmem:[#allocation8 + $0x78] sm:$0xff]
        %v440 = vld [vmem:[%s5] sm:$0x1]
        %v442 = vlaneseq
        %v443 = vshrl.u32 %v442, 7
        %v444 = vsub.s32 0, %v443
        %v445 = vrot.slane %v440, %v444
        %447 = vmatprep.subr.mxu0 0.0
        %448 = vmatpush1.msra.mxu0 %v439
        %449 = vmatprep.subr.mxu0 0.0
        %450 = vmatpush1.msra.mxu0 %v438
        %451 = vmatprep.subr.mxu0 0.0
        %452 = vmatpush1.msra.mxu0 %v437
        %453 = vmatprep.subr.mxu0 0.0
        %454 = vmatpush1.msra.mxu0 %v436
        %455 = vmatprep.subr.mxu0 0.0
        %456 = vmatpush1.msra.mxu0 %v435
        %457 = vmatprep.subr.mxu0 0.0
        %458 = vmatpush1.msra.mxu0 %v434
        %459 = vmatprep.subr.mxu0 0.0
        %460 = vmatpush1.msra.mxu0 %v433
        %461 = vmatprep.subr.mxu0 0.0
        %462 = vmatpush1.msra.mxu0 %v432
        %463 = vmatprep.subr.mxu0 0.0
        %464 = vmatpush1.msra.mxu0 %v431
        %465 = vmatprep.subr.mxu0 0.0
        %466 = vmatpush1.msra.mxu0 %v430
        %467 = vmatprep.subr.mxu0 0.0
        %468 = vmatpush1.msra.mxu0 %v429
        %469 = vmatprep.subr.mxu0 0.0
        %470 = vmatpush1.msra.mxu0 %v428
        %471 = vmatprep.subr.mxu0 0.0
        %472 = vmatpush1.msra.mxu0 %v427
        %473 = vmatprep.subr.mxu0 0.0
        %474 = vmatpush1.msra.mxu0 %v426
        %475 = vmatprep.subr.mxu0 0.0
        %476 = vmatpush1.msra.mxu0 %v425
        %477 = vmatprep.subr.mxu0 0.0
        %478 = vmatpush1.msra.mxu0 %v424
        %479 = vmatprep.subr.mxu0 0.0
        %480 = vmatpush2.msra.mxu0 0.0
        %481 = vmatprep.subr.mxu0 0.0
        %482 = vmatpush2.msra.mxu0 0.0
        %483 = vmatprep.subr.mxu0 0.0
        %484 = vmatpush2.msra.mxu0 0.0
        %485 = vmatprep.subr.mxu0 0.0
        %486 = vmatpush2.msra.mxu0 0.0
        %487 = vmatprep.subr.mxu0 0.0
        %488 = vmatpush2.msra.mxu0 0.0
        %489 = vmatprep.subr.mxu0 0.0
        %490 = vmatpush2.msra.mxu0 0.0
        %491 = vmatprep.subr.mxu0 0.0
        %492 = vmatpush2.msra.mxu0 0.0
        %493 = vmatprep.subr.mxu0 0.0
        %494 = vmatpush2.msra.mxu0 0.0
        %495 = vmatprep.subr.mxu0 0.0
        %496 = vmatpush2.msra.mxu0 0.0
        %497 = vmatprep.subr.mxu0 0.0
        %498 = vmatpush2.msra.mxu0 0.0
        %499 = vmatprep.subr.mxu0 0.0
        %500 = vmatpush2.msra.mxu0 0.0
        %501 = vmatprep.subr.mxu0 0.0
        %502 = vmatpush2.msra.mxu0 0.0
        %503 = vmatprep.subr.mxu0 0.0
        %504 = vmatpush2.msra.mxu0 0.0
        %505 = vmatprep.subr.mxu0 0.0
        %506 = vmatpush2.msra.mxu0 0.0
        %507 = vmatprep.subr.mxu0 0.0
        %508 = vmatpush2.msra.mxu0 0.0
        %509 = vmatprep.subr.mxu0 0.0
        %510 = vmatpush2.msra.mxu0 0.0
        %511 = vmatprep.mubr.f32.mxu0 0.0
        %512 = vmatmul.mubr.f32.gmra.mxu0 %v408
        %v513 = vpop.f32.mrf.mxu0
        %v514 = vadd.f32 %v445, %v513
        %v515 = vpop.f32.mrf.mxu0
        %516 = vmatprep.mubr.f32.mxu0 0.0
        %517 = vmatmul.mubr.f32.gmra.mxu0 %v409
        %v518 = vpop.f32.mrf.mxu0
        %v519 = vadd.f32 %v445, %v518
        %v520 = vpop.f32.mrf.mxu0
        %521 = vmatprep.mubr.f32.mxu0 0.0
        %522 = vmatmul.mubr.f32.gmra.mxu0 %v410
        %v523 = vpop.f32.mrf.mxu0
        %v524 = vadd.f32 %v445, %v523
        %v525 = vpop.f32.mrf.mxu0
        %526 = vmatprep.mubr.f32.mxu0 0.0
        %527 = vmatmul.mubr.f32.gmra.mxu0 %v411
        %v528 = vpop.f32.mrf.mxu0
        %v529 = vadd.f32 %v445, %v528
        %v530 = vpop.f32.mrf.mxu0
        %531 = vmatprep.mubr.f32.mxu0 0.0
        %532 = vmatmul.mubr.f32.gmra.mxu0 %v412
        %v533 = vpop.f32.mrf.mxu0
        %v534 = vadd.f32 %v445, %v533
        %v535 = vpop.f32.mrf.mxu0
        %536 = vmatprep.mubr.f32.mxu0 0.0
        %537 = vmatmul.mubr.f32.gmra.mxu0 %v413
        %v538 = vpop.f32.mrf.mxu0
        %v539 = vadd.f32 %v445, %v538
        %v540 = vpop.f32.mrf.mxu0
        %541 = vmatprep.mubr.f32.mxu0 0.0
        %542 = vmatmul.mubr.f32.gmra.mxu0 %v414
        %v543 = vpop.f32.mrf.mxu0
        %v544 = vadd.f32 %v445, %v543
        %v545 = vpop.f32.mrf.mxu0
        %546 = vmatprep.mubr.f32.mxu0 0.0
        %547 = vmatmul.mubr.f32.gmra.mxu0 %v415
        %v548 = vpop.f32.mrf.mxu0
        %v549 = vadd.f32 %v445, %v548
        %v550 = vpop.f32.mrf.mxu0
        %551 = vmatprep.mubr.f32.mxu0 0.0
        %552 = vmatmul.mubr.f32.gmra.mxu0 %v416
        %v553 = vpop.f32.mrf.mxu0
        %v554 = vadd.f32 %v445, %v553
        %v555 = vpop.f32.mrf.mxu0
        %556 = vmatprep.mubr.f32.mxu0 0.0
        %557 = vmatmul.mubr.f32.gmra.mxu0 %v417
        %v558 = vpop.f32.mrf.mxu0
        %v559 = vadd.f32 %v445, %v558
        %v560 = vpop.f32.mrf.mxu0
        %561 = vmatprep.mubr.f32.mxu0 0.0
        %562 = vmatmul.mubr.f32.gmra.mxu0 %v418
        %v563 = vpop.f32.mrf.mxu0
        %v564 = vadd.f32 %v445, %v563
        %v565 = vpop.f32.mrf.mxu0
        %566 = vmatprep.mubr.f32.mxu0 0.0
        %567 = vmatmul.mubr.f32.gmra.mxu0 %v419
        %v568 = vpop.f32.mrf.mxu0
        %v569 = vadd.f32 %v445, %v568
        %v570 = vpop.f32.mrf.mxu0
        %571 = vmatprep.mubr.f32.mxu0 0.0
        %572 = vmatmul.mubr.f32.gmra.mxu0 %v420
        %v573 = vpop.f32.mrf.mxu0
        %v574 = vadd.f32 %v445, %v573
        %v575 = vpop.f32.mrf.mxu0
        %576 = vmatprep.mubr.f32.mxu0 0.0
        %577 = vmatmul.mubr.f32.gmra.mxu0 %v421
        %v578 = vpop.f32.mrf.mxu0
        %v579 = vadd.f32 %v445, %v578
        %v580 = vpop.f32.mrf.mxu0
        %581 = vmatprep.mubr.f32.mxu0 0.0
        %582 = vmatmul.mubr.f32.gmra.mxu0 %v422
        %v583 = vpop.f32.mrf.mxu0
        %v584 = vadd.f32 %v445, %v583
        %v585 = vpop.f32.mrf.mxu0
        %586 = vmatprep.mubr.f32.mxu0 0.0
        %587 = vmatmul.mubr.f32.gmra.mxu0 %v423
        %v588 = vpop.f32.mrf.mxu0
        %v589 = vadd.f32 %v445, %v588
        %v590 = vpop.f32.mrf.mxu0
        %591 = vdwg.mxu0
        %v592 = vmax.f32 %v514, 0.0
        %v593 = vmax.f32 %v519, 0.0
        %v594 = vmax.f32 %v524, 0.0
        %v595 = vmax.f32 %v529, 0.0
        %v596 = vmax.f32 %v534, 0.0
        %v597 = vmax.f32 %v539, 0.0
        %v598 = vmax.f32 %v544, 0.0
        %v599 = vmax.f32 %v549, 0.0
        %v600 = vmax.f32 %v554, 0.0
        %v601 = vmax.f32 %v559, 0.0
        %v602 = vmax.f32 %v564, 0.0
        %v603 = vmax.f32 %v569, 0.0
        %v604 = vmax.f32 %v574, 0.0
        %v605 = vmax.f32 %v579, 0.0
        %v606 = vmax.f32 %v584, 0.0
        %v607 = vmax.f32 %v589, 0.0
        %s608 = scalar_lea.vmem [#allocation3], 16
        %609 = vst [vmem:[%s608] sm:$0xff] %v592
        %610 = vst [vmem:[%s608 + $0x8] sm:$0xff] %v593
        %611 = vst [vmem:[%s608 + $0x10] sm:$0xff] %v594
        %612 = vst [vmem:[%s608 + $0x18] sm:$0xff] %v595
        %613 = vst [vmem:[%s608 + $0x20] sm:$0xff] %v596
        %614 = vst [vmem:[%s608 + $0x28] sm:$0xff] %v597
        %615 = vst [vmem:[%s608 + $0x30] sm:$0xff] %v598
        %616 = vst [vmem:[%s608 + $0x38] sm:$0xff] %v599
        %617 = vst [vmem:[%s608 + $0x40] sm:$0xff] %v600
        %618 = vst [vmem:[%s608 + $0x48] sm:$0xff] %v601
        %619 = vst [vmem:[%s608 + $0x50] sm:$0xff] %v602
        %620 = vst [vmem:[%s608 + $0x58] sm:$0xff] %v603
        %621 = vst [vmem:[%s608 + $0x60] sm:$0xff] %v604
        %622 = vst [vmem:[%s608 + $0x68] sm:$0xff] %v605
        %623 = vst [vmem:[%s608 + $0x70] sm:$0xff] %v606
        %624 = vst [vmem:[%s608 + $0x78] sm:$0xff] %v607
        // Predicated region
        $region81: #{tpu_custom_call.1} parent=47 // pred_check
          %p625 = pneg %p366
        $region82: #{tpu_custom_call.1} parent=47 // pred_check_branch
          %627 = sbr.rel (%p625) target = $region84
        $region83: #{tpu_custom_call.1} parent=47 // pred_region
          %s628 = smul.u32 16, 1
          %s629 = sshll.u32 %s628, 4
          %630 = dma.done [#allocation4], %s629
        $region84: #{tpu_custom_call.1} parent=47 // pred_fallthru
          _
        // Predicated region
        $region85: #{tpu_custom_call.1} parent=47 // pred_check
          %p631 = pneg %p386
        $region86: #{tpu_custom_call.1} parent=47 // pred_check_branch
          %633 = sbr.rel (%p631) target = $region88
        $region87: #{tpu_custom_call.1} parent=47 // pred_region
          %s634 = scalar_lea.sflag [#allocation4], 1
          %s635 = smul.u32 16, 1
          %s636 = sshll.u32 %s635, 4
          %637 = dma.done %s634, %s636
        $region88: #{tpu_custom_call.1} parent=47 // pred_fallthru
          _
        %v638 = vld [vmem:[#allocation2] sm:$0xff]
        %v639 = vld [vmem:[#allocation2 + $0x8] sm:$0xff]
        %v640 = vld [vmem:[#allocation2 + $0x10] sm:$0xff]
        %v641 = vld [vmem:[#allocation2 + $0x18] sm:$0xff]
        %v642 = vld [vmem:[#allocation8] sm:$0xff]
        %v643 = vld [vmem:[#allocation8 + $0x8] sm:$0xff]
        %v644 = vld [vmem:[#allocation8 + $0x10] sm:$0xff]
        %v645 = vld [vmem:[#allocation8 + $0x18] sm:$0xff]
        %v646 = vld [vmem:[#allocation8 + $0x20] sm:$0xff]
        %v647 = vld [vmem:[#allocation8 + $0x28] sm:$0xff]
        %v648 = vld [vmem:[#allocation8 + $0x30] sm:$0xff]
        %v649 = vld [vmem:[#allocation8 + $0x38] sm:$0xff]
        %v650 = vld [vmem:[#allocation8 + $0x40] sm:$0xff]
        %v651 = vld [vmem:[#allocation8 + $0x48] sm:$0xff]
        %v652 = vld [vmem:[#allocation8 + $0x50] sm:$0xff]
        %v653 = vld [vmem:[#allocation8 + $0x58] sm:$0xff]
        %v654 = vld [vmem:[#allocation8 + $0x60] sm:$0xff]
        %v655 = vld [vmem:[#allocation8 + $0x68] sm:$0xff]
        %v656 = vld [vmem:[#allocation8 + $0x70] sm:$0xff]
        %v657 = vld [vmem:[#allocation8 + $0x78] sm:$0xff]
        %v658 = vld [vmem:[%s5] sm:$0x1]
        %v660 = vlaneseq
        %v661 = vshrl.u32 %v660, 7
        %v662 = vsub.s32 0, %v661
        %v663 = vrot.slane %v658, %v662
        %665 = vmatprep.subr.mxu0 0.0
        %666 = vmatpush1.msra.mxu0 %v657
        %667 = vmatprep.subr.mxu0 0.0
        %668 = vmatpush1.msra.mxu0 %v656
        %669 = vmatprep.subr.mxu0 0.0
        %670 = vmatpush1.msra.mxu0 %v655
        %671 = vmatprep.subr.mxu0 0.0
        %672 = vmatpush1.msra.mxu0 %v654
        %673 = vmatprep.subr.mxu0 0.0
        %674 = vmatpush1.msra.mxu0 %v653
        %675 = vmatprep.subr.mxu0 0.0
        %676 = vmatpush1.msra.mxu0 %v652
        %677 = vmatprep.subr.mxu0 0.0
        %678 = vmatpush1.msra.mxu0 %v651
        %679 = vmatprep.subr.mxu0 0.0
        %680 = vmatpush1.msra.mxu0 %v650
        %681 = vmatprep.subr.mxu0 0.0
        %682 = vmatpush1.msra.mxu0 %v649
        %683 = vmatprep.subr.mxu0 0.0
        %684 = vmatpush1.msra.mxu0 %v648
        %685 = vmatprep.subr.mxu0 0.0
        %686 = vmatpush1.msra.mxu0 %v647
        %687 = vmatprep.subr.mxu0 0.0
        %688 = vmatpush1.msra.mxu0 %v646
        %689 = vmatprep.subr.mxu0 0.0
        %690 = vmatpush1.msra.mxu0 %v645
        %691 = vmatprep.subr.mxu0 0.0
        %692 = vmatpush1.msra.mxu0 %v644
        %693 = vmatprep.subr.mxu0 0.0
        %694 = vmatpush1.msra.mxu0 %v643
        %695 = vmatprep.subr.mxu0 0.0
        %696 = vmatpush1.msra.mxu0 %v642
        %697 = vmatprep.subr.mxu0 0.0
        %698 = vmatpush2.msra.mxu0 0.0
        %699 = vmatprep.subr.mxu0 0.0
        %700 = vmatpush2.msra.mxu0 0.0
        %701 = vmatprep.subr.mxu0 0.0
        %702 = vmatpush2.msra.mxu0 0.0
        %703 = vmatprep.subr.mxu0 0.0
        %704 = vmatpush2.msra.mxu0 0.0
        %705 = vmatprep.subr.mxu0 0.0
        %706 = vmatpush2.msra.mxu0 0.0
        %707 = vmatprep.subr.mxu0 0.0
        %708 = vmatpush2.msra.mxu0 0.0
        %709 = vmatprep.subr.mxu0 0.0
        %710 = vmatpush2.msra.mxu0 0.0
        %711 = vmatprep.subr.mxu0 0.0
        %712 = vmatpush2.msra.mxu0 0.0
        %713 = vmatprep.subr.mxu0 0.0
        %714 = vmatpush2.msra.mxu0 0.0
        %715 = vmatprep.subr.mxu0 0.0
        %716 = vmatpush2.msra.mxu0 0.0
        %717 = vmatprep.subr.mxu0 0.0
        %718 = vmatpush2.msra.mxu0 0.0
        %719 = vmatprep.subr.mxu0 0.0
        %720 = vmatpush2.msra.mxu0 0.0
        %721 = vmatprep.subr.mxu0 0.0
        %722 = vmatpush2.msra.mxu0 0.0
        %723 = vmatprep.subr.mxu0 0.0
        %724 = vmatpush2.msra.mxu0 0.0
        %725 = vmatprep.subr.mxu0 0.0
        %726 = vmatpush2.msra.mxu0 0.0
        %727 = vmatprep.subr.mxu0 0.0
        %728 = vmatpush2.msra.mxu0 0.0
        %729 = vmatprep.mubr.f32.mxu0 0.0
        %730 = vmatmul.mubr.f32.gmra.mxu0 %v638
        %v731 = vpop.f32.mrf.mxu0
        %v732 = vadd.f32 %v663, %v731
        %v733 = vpop.f32.mrf.mxu0
        %734 = vmatprep.mubr.f32.mxu0 0.0
        %735 = vmatmul.mubr.f32.gmra.mxu0 %v639
        %v736 = vpop.f32.mrf.mxu0
        %v737 = vadd.f32 %v663, %v736
        %v738 = vpop.f32.mrf.mxu0
        %739 = vmatprep.mubr.f32.mxu0 0.0
        %740 = vmatmul.mubr.f32.gmra.mxu0 %v640
        %v741 = vpop.f32.mrf.mxu0
        %v742 = vadd.f32 %v663, %v741
        %v743 = vpop.f32.mrf.mxu0
        %744 = vmatprep.mubr.f32.mxu0 0.0
        %745 = vmatmul.mubr.f32.gmra.mxu0 %v641
        %v746 = vpop.f32.mrf.mxu0
        %v747 = vadd.f32 %v663, %v746
        %v748 = vpop.f32.mrf.mxu0
        %749 = vdwg.mxu0
        %v750 = vmax.f32 %v732, 0.0
        %v751 = vmax.f32 %v737, 0.0
        %v752 = vmax.f32 %v742, 0.0
        %v753 = vmax.f32 %v747, 0.0
        %754 = vst [vmem:[#allocation3] sm:$0xff] %v750
        %755 = vst [vmem:[#allocation3 + $0x8] sm:$0xff] %v751
        %s756 = scalar_lea.vmem [#allocation3], 144
        %757 = vst [vmem:[%s756] sm:$0xff] %v752
        %758 = vst [vmem:[%s756 + $0x8] sm:$0xff] %v753
        %p759 = scmp.eq.s32.totalorder %s32, 0
        // Predicated region
        $region89: #{tpu_custom_call.1} parent=47 // pred_check
          %p760 = pneg %p759
        $region90: #{tpu_custom_call.1} parent=47 // pred_check_branch
          %762 = sbr.rel (%p760) target = $region92
        $region91: #{tpu_custom_call.1} parent=47 // pred_region
          %763 = vst [vmem:[#allocation3] sm:$0xff] 0.0
          %764 = vst [vmem:[#allocation3 + $0x8] sm:$0xff] 0.0
        $region92: #{tpu_custom_call.1} parent=47 // pred_fallthru
          _
        %p765 = scmp.eq.s32.totalorder %s32, 1
        // Predicated region
        $region93: #{tpu_custom_call.1} parent=47 // pred_check
          %p766 = pneg %p765
        $region94: #{tpu_custom_call.1} parent=47 // pred_check_branch
          %768 = sbr.rel (%p766) target = $region96
        $region95: #{tpu_custom_call.1} parent=47 // pred_region
          %769 = vst [vmem:[%s756] sm:$0xff] 0.0
          %770 = vst [vmem:[%s756 + $0x8] sm:$0xff] 0.0
        $region96: #{tpu_custom_call.1} parent=47 // pred_fallthru
          _
        %v771 = vld [vmem:[#allocation3] sm:$0xff]
        %v772 = vld [vmem:[#allocation3 + $0x8] sm:$0xff]
        %v773 = vld [vmem:[#allocation3 + $0x10] sm:$0xff]
        %v774 = vld [vmem:[#allocation3 + $0x18] sm:$0xff]
        %v775 = vld [vmem:[#allocation3 + $0x20] sm:$0xff]
        %v776 = vld [vmem:[#allocation3 + $0x28] sm:$0xff]
        %v777 = vld [vmem:[#allocation3 + $0x30] sm:$0xff]
        %v778 = vld [vmem:[#allocation3 + $0x38] sm:$0xff]
        %v779 = vld [vmem:[#allocation3 + $0x40] sm:$0xff]
        %v780 = vld [vmem:[#allocation3 + $0x48] sm:$0xff]
        %v781 = vld [vmem:[#allocation3 + $0x50] sm:$0xff]
        %v782 = vld [vmem:[#allocation3 + $0x58] sm:$0xff]
        %v783 = vld [vmem:[#allocation3 + $0x60] sm:$0xff]
        %v784 = vld [vmem:[#allocation3 + $0x68] sm:$0xff]
        %v785 = vld [vmem:[#allocation3 + $0x70] sm:$0xff]
        %v786 = vld [vmem:[#allocation3 + $0x78] sm:$0xff]
        %v787 = vld [vmem:[#allocation3 + $0x80] sm:$0xff]
        %v788 = vld [vmem:[#allocation3 + $0x88] sm:$0xff]
        %v789 = vld [vmem:[#allocation3 + $0x90] sm:$0xff]
        %v790 = vld [vmem:[#allocation3 + $0x98] sm:$0xff]
        %v791 = vlaneseq
        %v792 = vshrl.u32 %v791, 7
        %v793 = vadd.s32 %v792, 8
        %vm794 = vcmp.eq.s32.totalorder %v792, 0
        %vm795 = vcmp.eq.s32.totalorder %v793, 0
        %v796 = vrot.slane %v771, 7
        %v797 = vrot.slane %v773, 7
        %v798 = vrot.slane %v775, 7
        %v799 = vrot.slane %v777, 7
        %v800 = vrot.slane %v779, 7
        %v801 = vrot.slane %v781, 7
        %v802 = vrot.slane %v783, 7
        %v803 = vrot.slane %v785, 7
        %v804 = vrot.slane %v787, 7
        %v805 = vrot.slane %v789, 7
        %v806 = vrot.slane %v772, 7
        %v807 = vrot.slane %v774, 7
        %v808 = vrot.slane %v776, 7
        %v809 = vrot.slane %v778, 7
        %v810 = vrot.slane %v780, 7
        %v811 = vrot.slane %v782, 7
        %v812 = vrot.slane %v784, 7
        %v813 = vrot.slane %v786, 7
        %v814 = vrot.slane %v788, 7
        %v815 = vrot.slane %v790, 7
        %vm816 = vcmp.lt.s32.totalorder %v792, 1
        %v817 = vsel %vm816, %v796, %v806
        %v818 = vsel %vm816, %v797, %v807
        %v819 = vsel %vm816, %v798, %v808
        %v820 = vsel %vm816, %v799, %v809
        %v821 = vsel %vm816, %v800, %v810
        %v822 = vsel %vm816, %v801, %v811
        %v823 = vsel %vm816, %v802, %v812
        %v824 = vsel %vm816, %v803, %v813
        %v825 = vsel %vm816, %v804, %v814
        %v826 = vsel %vm816, %v805, %v815
        %v827 = vsel %vm816, %v806, %v796
        %v828 = vsel %vm816, %v807, %v797
        %v829 = vsel %vm816, %v808, %v798
        %v830 = vsel %vm816, %v809, %v799
        %v831 = vsel %vm816, %v810, %v800
        %v832 = vsel %vm816, %v811, %v801
        %v833 = vsel %vm816, %v812, %v802
        %v834 = vsel %vm816, %v813, %v803
        %v835 = vsel %vm816, %v814, %v804
        %v836 = vsel %vm816, %v815, %v805
        %v837 = vsel %vm794, 0.0, %v827
        %v838 = vsel %vm795, 0.0, %v817
        %v839 = vsel %vm794, 0.0, %v828
        %v840 = vsel %vm795, 0.0, %v818
        %v841 = vsel %vm794, 0.0, %v829
        %v842 = vsel %vm795, 0.0, %v819
        %v843 = vsel %vm794, 0.0, %v830
        %v844 = vsel %vm795, 0.0, %v820
        %v845 = vsel %vm794, 0.0, %v831
        %v846 = vsel %vm795, 0.0, %v821
        %v847 = vsel %vm794, 0.0, %v832
        %v848 = vsel %vm795, 0.0, %v822
        %v849 = vsel %vm794, 0.0, %v833
        %v850 = vsel %vm795, 0.0, %v823
        %v851 = vsel %vm794, 0.0, %v834
        %v852 = vsel %vm795, 0.0, %v824
        %v853 = vsel %vm794, 0.0, %v835
        %v854 = vsel %vm795, 0.0, %v825
        %v855 = vsel %vm794, 0.0, %v836
        %v856 = vsel %vm795, 0.0, %v826
        %vm857 = vcmp.eq.s32.totalorder %v792, 15
        %vm858 = vcmp.eq.s32.totalorder %v793, 15
        %v859 = vrot.slane %v771, 1
        %v860 = vrot.slane %v773, 1
        %v861 = vrot.slane %v775, 1
        %v862 = vrot.slane %v777, 1
        %v863 = vrot.slane %v779, 1
        %v864 = vrot.slane %v781, 1
        %v865 = vrot.slane %v783, 1
        %v866 = vrot.slane %v785, 1
        %v867 = vrot.slane %v787, 1
        %v868 = vrot.slane %v789, 1
        %v869 = vrot.slane %v772, 1
        %v870 = vrot.slane %v774, 1
        %v871 = vrot.slane %v776, 1
        %v872 = vrot.slane %v778, 1
        %v873 = vrot.slane %v780, 1
        %v874 = vrot.slane %v782, 1
        %v875 = vrot.slane %v784, 1
        %v876 = vrot.slane %v786, 1
        %v877 = vrot.slane %v788, 1
        %v878 = vrot.slane %v790, 1
        %vm879 = vcmp.lt.s32.totalorder %v792, 7
        %v880 = vsel %vm879, %v859, %v869
        %v881 = vsel %vm879, %v860, %v870
        %v882 = vsel %vm879, %v861, %v871
        %v883 = vsel %vm879, %v862, %v872
        %v884 = vsel %vm879, %v863, %v873
        %v885 = vsel %vm879, %v864, %v874
        %v886 = vsel %vm879, %v865, %v875
        %v887 = vsel %vm879, %v866, %v876
        %v888 = vsel %vm879, %v867, %v877
        %v889 = vsel %vm879, %v868, %v878
        %v890 = vsel %vm879, %v869, %v859
        %v891 = vsel %vm879, %v870, %v860
        %v892 = vsel %vm879, %v871, %v861
        %v893 = vsel %vm879, %v872, %v862
        %v894 = vsel %vm879, %v873, %v863
        %v895 = vsel %vm879, %v874, %v864
        %v896 = vsel %vm879, %v875, %v865
        %v897 = vsel %vm879, %v876, %v866
        %v898 = vsel %vm879, %v877, %v867
        %v899 = vsel %vm879, %v878, %v868
        %v900 = vsel %vm857, 0.0, %v880
        %v901 = vsel %vm858, 0.0, %v890
        %v902 = vsel %vm857, 0.0, %v881
        %v903 = vsel %vm858, 0.0, %v891
        %v904 = vsel %vm857, 0.0, %v882
        %v905 = vsel %vm858, 0.0, %v892
        %v906 = vsel %vm857, 0.0, %v883
        %v907 = vsel %vm858, 0.0, %v893
        %v908 = vsel %vm857, 0.0, %v884
        %v909 = vsel %vm858, 0.0, %v894
        %v910 = vsel %vm857, 0.0, %v885
        %v911 = vsel %vm858, 0.0, %v895
        %v912 = vsel %vm857, 0.0, %v886
        %v913 = vsel %vm858, 0.0, %v896
        %v914 = vsel %vm857, 0.0, %v887
        %v915 = vsel %vm858, 0.0, %v897
        %v916 = vsel %vm857, 0.0, %v888
        %v917 = vsel %vm858, 0.0, %v898
        %v918 = vsel %vm857, 0.0, %v889
        %v919 = vsel %vm858, 0.0, %v899
        %v920 = vld [vmem:[#allocation10] sm:$0xff]
        %v921 = vld [vmem:[#allocation10 + $0x8] sm:$0xff]
        %v922 = vld [vmem:[#allocation10 + $0x10] sm:$0xff]
        %v923 = vld [vmem:[#allocation10 + $0x18] sm:$0xff]
        %v924 = vld [vmem:[#allocation10 + $0x20] sm:$0xff]
        %v925 = vld [vmem:[#allocation10 + $0x28] sm:$0xff]
        %v926 = vld [vmem:[#allocation10 + $0x30] sm:$0xff]
        %v927 = vld [vmem:[#allocation10 + $0x38] sm:$0xff]
        %v928 = vld [vmem:[#allocation10 + $0x40] sm:$0xff]
        %v929 = vld [vmem:[#allocation10 + $0x48] sm:$0xff]
        %v930 = vld [vmem:[#allocation10 + $0x50] sm:$0xff]
        %v931 = vld [vmem:[#allocation10 + $0x58] sm:$0xff]
        %v932 = vld [vmem:[#allocation10 + $0x60] sm:$0xff]
        %v933 = vld [vmem:[#allocation10 + $0x68] sm:$0xff]
        %v934 = vld [vmem:[#allocation10 + $0x70] sm:$0xff]
        %v935 = vld [vmem:[#allocation10 + $0x78] sm:$0xff]
        %v936 = vld [vmem:[#allocation10 + $0x80] sm:$0xff]
        %v937 = vld [vmem:[#allocation10 + $0x88] sm:$0xff]
        %v938 = vld [vmem:[#allocation10 + $0x90] sm:$0xff]
        %v939 = vld [vmem:[#allocation10 + $0x98] sm:$0xff]
        %v940 = vld [vmem:[#allocation10 + $0xa0] sm:$0xff]
        %v941 = vld [vmem:[#allocation10 + $0xa8] sm:$0xff]
        %v942 = vld [vmem:[#allocation10 + $0xb0] sm:$0xff]
        %v943 = vld [vmem:[#allocation10 + $0xb8] sm:$0xff]
        %v944 = vld [vmem:[#allocation10 + $0xc0] sm:$0xff]
        %v945 = vld [vmem:[#allocation10 + $0xc8] sm:$0xff]
        %v946 = vld [vmem:[#allocation10 + $0xd0] sm:$0xff]
        %v947 = vld [vmem:[#allocation10 + $0xd8] sm:$0xff]
        %v948 = vld [vmem:[#allocation10 + $0xe0] sm:$0xff]
        %v949 = vld [vmem:[#allocation10 + $0xe8] sm:$0xff]
        %v950 = vld [vmem:[#allocation10 + $0xf0] sm:$0xff]
        %v951 = vld [vmem:[#allocation10 + $0xf8] sm:$0xff]
        %v952 = vld [vmem:[#allocation10 + $0x100] sm:$0xff]
        %v953 = vld [vmem:[#allocation10 + $0x108] sm:$0xff]
        %v954 = vld [vmem:[#allocation10 + $0x110] sm:$0xff]
        %v955 = vld [vmem:[#allocation10 + $0x118] sm:$0xff]
        %v956 = vld [vmem:[#allocation10 + $0x120] sm:$0xff]
        %v957 = vld [vmem:[#allocation10 + $0x128] sm:$0xff]
        %v958 = vld [vmem:[#allocation10 + $0x130] sm:$0xff]
        %v959 = vld [vmem:[#allocation10 + $0x138] sm:$0xff]
        %v960 = vld [vmem:[#allocation10 + $0x140] sm:$0xff]
        %v961 = vld [vmem:[#allocation10 + $0x148] sm:$0xff]
        %v962 = vld [vmem:[#allocation10 + $0x150] sm:$0xff]
        %v963 = vld [vmem:[#allocation10 + $0x158] sm:$0xff]
        %v964 = vld [vmem:[#allocation10 + $0x160] sm:$0xff]
        %v965 = vld [vmem:[#allocation10 + $0x168] sm:$0xff]
        %v966 = vld [vmem:[#allocation10 + $0x170] sm:$0xff]
        %v967 = vld [vmem:[#allocation10 + $0x178] sm:$0xff]
        %v968 = vld [vmem:[#allocation10 + $0x180] sm:$0xff]
        %v969 = vld [vmem:[#allocation10 + $0x188] sm:$0xff]
        %v970 = vld [vmem:[#allocation10 + $0x190] sm:$0xff]
        %v971 = vld [vmem:[#allocation10 + $0x198] sm:$0xff]
        %v972 = vld [vmem:[#allocation10 + $0x1a0] sm:$0xff]
        %v973 = vld [vmem:[#allocation10 + $0x1a8] sm:$0xff]
        %v974 = vld [vmem:[#allocation10 + $0x1b0] sm:$0xff]
        %v975 = vld [vmem:[#allocation10 + $0x1b8] sm:$0xff]
        %v976 = vld [vmem:[#allocation10 + $0x1c0] sm:$0xff]
        %v977 = vld [vmem:[#allocation10 + $0x1c8] sm:$0xff]
        %v978 = vld [vmem:[#allocation10 + $0x1d0] sm:$0xff]
        %v979 = vld [vmem:[#allocation10 + $0x1d8] sm:$0xff]
        %v980 = vld [vmem:[#allocation10 + $0x1e0] sm:$0xff]
        %v981 = vld [vmem:[#allocation10 + $0x1e8] sm:$0xff]
        %v982 = vld [vmem:[#allocation10 + $0x1f0] sm:$0xff]
        %v983 = vld [vmem:[#allocation10 + $0x1f8] sm:$0xff]
        %v984 = vld [vmem:[#allocation10 + $0x200] sm:$0xff]
        %v985 = vld [vmem:[#allocation10 + $0x208] sm:$0xff]
        %v986 = vld [vmem:[#allocation10 + $0x210] sm:$0xff]
        %v987 = vld [vmem:[#allocation10 + $0x218] sm:$0xff]
        %v988 = vld [vmem:[#allocation10 + $0x220] sm:$0xff]
        %v989 = vld [vmem:[#allocation10 + $0x228] sm:$0xff]
        %v990 = vld [vmem:[#allocation10 + $0x230] sm:$0xff]
        %v991 = vld [vmem:[#allocation10 + $0x238] sm:$0xff]
        %v992 = vld [vmem:[#allocation10 + $0x240] sm:$0xff]
        %v993 = vld [vmem:[#allocation10 + $0x248] sm:$0xff]
        %v994 = vld [vmem:[#allocation10 + $0x250] sm:$0xff]
        %v995 = vld [vmem:[#allocation10 + $0x258] sm:$0xff]
        %v996 = vld [vmem:[#allocation10 + $0x260] sm:$0xff]
        %v997 = vld [vmem:[#allocation10 + $0x268] sm:$0xff]
        %v998 = vld [vmem:[#allocation10 + $0x270] sm:$0xff]
        %v999 = vld [vmem:[#allocation10 + $0x278] sm:$0xff]
        %v1000 = vld [vmem:[#allocation10 + $0x280] sm:$0xff]
        %v1001 = vld [vmem:[#allocation10 + $0x288] sm:$0xff]
        %v1002 = vld [vmem:[#allocation10 + $0x290] sm:$0xff]
        %v1003 = vld [vmem:[#allocation10 + $0x298] sm:$0xff]
        %v1004 = vld [vmem:[#allocation10 + $0x2a0] sm:$0xff]
        %v1005 = vld [vmem:[#allocation10 + $0x2a8] sm:$0xff]
        %v1006 = vld [vmem:[#allocation10 + $0x2b0] sm:$0xff]
        %v1007 = vld [vmem:[#allocation10 + $0x2b8] sm:$0xff]
        %v1008 = vld [vmem:[#allocation10 + $0x2c0] sm:$0xff]
        %v1009 = vld [vmem:[#allocation10 + $0x2c8] sm:$0xff]
        %v1010 = vld [vmem:[#allocation10 + $0x2d0] sm:$0xff]
        %v1011 = vld [vmem:[#allocation10 + $0x2d8] sm:$0xff]
        %v1012 = vld [vmem:[#allocation10 + $0x2e0] sm:$0xff]
        %v1013 = vld [vmem:[#allocation10 + $0x2e8] sm:$0xff]
        %v1014 = vld [vmem:[#allocation10 + $0x2f0] sm:$0xff]
        %v1015 = vld [vmem:[#allocation10 + $0x2f8] sm:$0xff]
        %v1016 = vld [vmem:[#allocation10 + $0x300] sm:$0xff]
        %v1017 = vld [vmem:[#allocation10 + $0x308] sm:$0xff]
        %v1018 = vld [vmem:[#allocation10 + $0x310] sm:$0xff]
        %v1019 = vld [vmem:[#allocation10 + $0x318] sm:$0xff]
        %v1020 = vld [vmem:[#allocation10 + $0x320] sm:$0xff]
        %v1021 = vld [vmem:[#allocation10 + $0x328] sm:$0xff]
        %v1022 = vld [vmem:[#allocation10 + $0x330] sm:$0xff]
        %v1023 = vld [vmem:[#allocation10 + $0x338] sm:$0xff]
        %v1024 = vld [vmem:[#allocation10 + $0x340] sm:$0xff]
        %v1025 = vld [vmem:[#allocation10 + $0x348] sm:$0xff]
        %v1026 = vld [vmem:[#allocation10 + $0x350] sm:$0xff]
        %v1027 = vld [vmem:[#allocation10 + $0x358] sm:$0xff]
        %v1028 = vld [vmem:[#allocation10 + $0x360] sm:$0xff]
        %v1029 = vld [vmem:[#allocation10 + $0x368] sm:$0xff]
        %v1030 = vld [vmem:[#allocation10 + $0x370] sm:$0xff]
        %v1031 = vld [vmem:[#allocation10 + $0x378] sm:$0xff]
        %v1032 = vld [vmem:[#allocation10 + $0x380] sm:$0xff]
        %v1033 = vld [vmem:[#allocation10 + $0x388] sm:$0xff]
        %v1034 = vld [vmem:[#allocation10 + $0x390] sm:$0xff]
        %v1035 = vld [vmem:[#allocation10 + $0x398] sm:$0xff]
        %v1036 = vld [vmem:[#allocation10 + $0x3a0] sm:$0xff]
        %v1037 = vld [vmem:[#allocation10 + $0x3a8] sm:$0xff]
        %v1038 = vld [vmem:[#allocation10 + $0x3b0] sm:$0xff]
        %v1039 = vld [vmem:[#allocation10 + $0x3b8] sm:$0xff]
        %v1040 = vld [vmem:[#allocation10 + $0x3c0] sm:$0xff]
        %v1041 = vld [vmem:[#allocation10 + $0x3c8] sm:$0xff]
        %v1042 = vld [vmem:[#allocation10 + $0x3d0] sm:$0xff]
        %v1043 = vld [vmem:[#allocation10 + $0x3d8] sm:$0xff]
        %v1044 = vld [vmem:[#allocation10 + $0x3e0] sm:$0xff]
        %v1045 = vld [vmem:[#allocation10 + $0x3e8] sm:$0xff]
        %v1046 = vld [vmem:[#allocation10 + $0x3f0] sm:$0xff]
        %v1047 = vld [vmem:[#allocation10 + $0x3f8] sm:$0xff]
        %v1048 = vld [vmem:[#allocation10 + $0x400] sm:$0xff]
        %v1049 = vld [vmem:[#allocation10 + $0x408] sm:$0xff]
        %v1050 = vld [vmem:[#allocation10 + $0x410] sm:$0xff]
        %v1051 = vld [vmem:[#allocation10 + $0x418] sm:$0xff]
        %v1052 = vld [vmem:[#allocation10 + $0x420] sm:$0xff]
        %v1053 = vld [vmem:[#allocation10 + $0x428] sm:$0xff]
        %v1054 = vld [vmem:[#allocation10 + $0x430] sm:$0xff]
        %v1055 = vld [vmem:[#allocation10 + $0x438] sm:$0xff]
        %v1056 = vld [vmem:[#allocation10 + $0x440] sm:$0xff]
        %v1057 = vld [vmem:[#allocation10 + $0x448] sm:$0xff]
        %v1058 = vld [vmem:[#allocation10 + $0x450] sm:$0xff]
        %v1059 = vld [vmem:[#allocation10 + $0x458] sm:$0xff]
        %v1060 = vld [vmem:[#allocation10 + $0x460] sm:$0xff]
        %v1061 = vld [vmem:[#allocation10 + $0x468] sm:$0xff]
        %v1062 = vld [vmem:[#allocation10 + $0x470] sm:$0xff]
        %v1063 = vld [vmem:[#allocation10 + $0x478] sm:$0xff]
        %v1064 = vld [vmem:[%s6] sm:$0x1]
        %v1066 = vlaneseq
        %v1067 = vshrl.u32 %v1066, 7
        %v1068 = vsub.s32 0, %v1067
        %v1069 = vrot.slane %v1064, %v1068
        %1071 = vmatprep.subr.mxu0 0.0
        %1072 = vmatpush1.msra.mxu0 %v935
        %1073 = vmatprep.subr.mxu0 0.0
        %1074 = vmatpush1.msra.mxu0 %v934
        %1075 = vmatprep.subr.mxu0 0.0
        %1076 = vmatpush1.msra.mxu0 %v933
        %1077 = vmatprep.subr.mxu0 0.0
        %1078 = vmatpush1.msra.mxu0 %v932
        %1079 = vmatprep.subr.mxu0 0.0
        %1080 = vmatpush1.msra.mxu0 %v931
        %1081 = vmatprep.subr.mxu0 0.0
        %1082 = vmatpush1.msra.mxu0 %v930
        %1083 = vmatprep.subr.mxu0 0.0
        %1084 = vmatpush1.msra.mxu0 %v929
        %1085 = vmatprep.subr.mxu0 0.0
        %1086 = vmatpush1.msra.mxu0 %v928
        %1087 = vmatprep.subr.mxu0 0.0
        %1088 = vmatpush1.msra.mxu0 %v927
        %1089 = vmatprep.subr.mxu0 0.0
        %1090 = vmatpush1.msra.mxu0 %v926
        %1091 = vmatprep.subr.mxu0 0.0
        %1092 = vmatpush1.msra.mxu0 %v925
        %1093 = vmatprep.subr.mxu0 0.0
        %1094 = vmatpush1.msra.mxu0 %v924
        %1095 = vmatprep.subr.mxu0 0.0
        %1096 = vmatpush1.msra.mxu0 %v923
        %1097 = vmatprep.subr.mxu0 0.0
        %1098 = vmatpush1.msra.mxu0 %v922
        %1099 = vmatprep.subr.mxu0 0.0
        %1100 = vmatpush1.msra.mxu0 %v921
        %1101 = vmatprep.subr.mxu0 0.0
        %1102 = vmatpush1.msra.mxu0 %v920
        %1103 = vmatprep.subr.mxu0 0.0
        %1104 = vmatpush2.msra.mxu0 %v951
        %1105 = vmatprep.subr.mxu0 0.0
        %1106 = vmatpush2.msra.mxu0 %v950
        %1107 = vmatprep.subr.mxu0 0.0
        %1108 = vmatpush2.msra.mxu0 %v949
        %1109 = vmatprep.subr.mxu0 0.0
        %1110 = vmatpush2.msra.mxu0 %v948
        %1111 = vmatprep.subr.mxu0 0.0
        %1112 = vmatpush2.msra.mxu0 %v947
        %1113 = vmatprep.subr.mxu0 0.0
        %1114 = vmatpush2.msra.mxu0 %v946
        %1115 = vmatprep.subr.mxu0 0.0
        %1116 = vmatpush2.msra.mxu0 %v945
        %1117 = vmatprep.subr.mxu0 0.0
        %1118 = vmatpush2.msra.mxu0 %v944
        %1119 = vmatprep.subr.mxu0 0.0
        %1120 = vmatpush2.msra.mxu0 %v943
        %1121 = vmatprep.subr.mxu0 0.0
        %1122 = vmatpush2.msra.mxu0 %v942
        %1123 = vmatprep.subr.mxu0 0.0
        %1124 = vmatpush2.msra.mxu0 %v941
        %1125 = vmatprep.subr.mxu0 0.0
        %1126 = vmatpush2.msra.mxu0 %v940
        %1127 = vmatprep.subr.mxu0 0.0
        %1128 = vmatpush2.msra.mxu0 %v939
        %1129 = vmatprep.subr.mxu0 0.0
        %1130 = vmatpush2.msra.mxu0 %v938
        %1131 = vmatprep.subr.mxu0 0.0
        %1132 = vmatpush2.msra.mxu0 %v937
        %1133 = vmatprep.subr.mxu0 0.0
        %1134 = vmatpush2.msra.mxu0 %v936
        %1135 = vmatprep.mubr.f32.mxu0 %v771
        %1136 = vmatmul.mubr.f32.gmra.mxu0 %v837
        %v1137 = vpop.f32.mrf.mxu0
        %v1138 = vadd.f32 %v1069, %v1137
        %v1139 = vpop.f32.mrf.mxu0
        %1140 = vmatprep.mubr.f32.mxu0 %v772
        %1141 = vmatmul.mubr.f32.gmra.mxu0 %v838
        %v1142 = vpop.f32.mrf.mxu0
        %v1143 = vadd.f32 %v1069, %v1142
        %v1144 = vpop.f32.mrf.mxu0
        %1145 = vmatprep.mubr.f32.mxu0 %v773
        %1146 = vmatmul.mubr.f32.gmra.mxu0 %v839
        %v1147 = vpop.f32.mrf.mxu0
        %v1148 = vadd.f32 %v1069, %v1147
        %v1149 = vpop.f32.mrf.mxu0
        %1150 = vmatprep.mubr.f32.mxu0 %v774
        %1151 = vmatmul.mubr.f32.gmra.mxu0 %v840
        %v1152 = vpop.f32.mrf.mxu0
        %v1153 = vadd.f32 %v1069, %v1152
        %v1154 = vpop.f32.mrf.mxu0
        %1155 = vmatprep.mubr.f32.mxu0 %v775
        %1156 = vmatmul.mubr.f32.gmra.mxu0 %v841
        %v1157 = vpop.f32.mrf.mxu0
        %v1158 = vadd.f32 %v1069, %v1157
        %v1159 = vpop.f32.mrf.mxu0
        %1160 = vmatprep.mubr.f32.mxu0 %v776
        %1161 = vmatmul.mubr.f32.gmra.mxu0 %v842
        %v1162 = vpop.f32.mrf.mxu0
        %v1163 = vadd.f32 %v1069, %v1162
        %v1164 = vpop.f32.mrf.mxu0
        %1165 = vmatprep.mubr.f32.mxu0 %v777
        %1166 = vmatmul.mubr.f32.gmra.mxu0 %v843
        %v1167 = vpop.f32.mrf.mxu0
        %v1168 = vadd.f32 %v1069, %v1167
        %v1169 = vpop.f32.mrf.mxu0
        %1170 = vmatprep.mubr.f32.mxu0 %v778
        %1171 = vmatmul.mubr.f32.gmra.mxu0 %v844
        %v1172 = vpop.f32.mrf.mxu0
        %v1173 = vadd.f32 %v1069, %v1172
        %v1174 = vpop.f32.mrf.mxu0
        %1175 = vmatprep.mubr.f32.mxu0 %v779
        %1176 = vmatmul.mubr.f32.gmra.mxu0 %v845
        %v1177 = vpop.f32.mrf.mxu0
        %v1178 = vadd.f32 %v1069, %v1177
        %v1179 = vpop.f32.mrf.mxu0
        %1180 = vmatprep.mubr.f32.mxu0 %v780
        %1181 = vmatmul.mubr.f32.gmra.mxu0 %v846
        %v1182 = vpop.f32.mrf.mxu0
        %v1183 = vadd.f32 %v1069, %v1182
        %v1184 = vpop.f32.mrf.mxu0
        %1185 = vmatprep.mubr.f32.mxu0 %v781
        %1186 = vmatmul.mubr.f32.gmra.mxu0 %v847
        %v1187 = vpop.f32.mrf.mxu0
        %v1188 = vadd.f32 %v1069, %v1187
        %v1189 = vpop.f32.mrf.mxu0
        %1190 = vmatprep.mubr.f32.mxu0 %v782
        %1191 = vmatmul.mubr.f32.gmra.mxu0 %v848
        %v1192 = vpop.f32.mrf.mxu0
        %v1193 = vadd.f32 %v1069, %v1192
        %v1194 = vpop.f32.mrf.mxu0
        %1195 = vmatprep.mubr.f32.mxu0 %v783
        %1196 = vmatmul.mubr.f32.gmra.mxu0 %v849
        %v1197 = vpop.f32.mrf.mxu0
        %v1198 = vadd.f32 %v1069, %v1197
        %v1199 = vpop.f32.mrf.mxu0
        %1200 = vmatprep.mubr.f32.mxu0 %v784
        %1201 = vmatmul.mubr.f32.gmra.mxu0 %v850
        %v1202 = vpop.f32.mrf.mxu0
        %v1203 = vadd.f32 %v1069, %v1202
        %v1204 = vpop.f32.mrf.mxu0
        %1205 = vmatprep.mubr.f32.mxu0 %v785
        %1206 = vmatmul.mubr.f32.gmra.mxu0 %v851
        %v1207 = vpop.f32.mrf.mxu0
        %v1208 = vadd.f32 %v1069, %v1207
        %v1209 = vpop.f32.mrf.mxu0
        %1210 = vmatprep.mubr.f32.mxu0 %v786
        %1211 = vmatmul.mubr.f32.gmra.mxu0 %v852
        %v1212 = vpop.f32.mrf.mxu0
        %v1213 = vadd.f32 %v1069, %v1212
        %v1214 = vpop.f32.mrf.mxu0
        %1215 = vdwg.mxu0
        %1216 = vmatprep.subr.mxu0 0.0
        %1217 = vmatpush1.msra.mxu0 %v967
        %1218 = vmatprep.subr.mxu0 0.0
        %1219 = vmatpush1.msra.mxu0 %v966
        %1220 = vmatprep.subr.mxu0 0.0
        %1221 = vmatpush1.msra.mxu0 %v965
        %1222 = vmatprep.subr.mxu0 0.0
        %1223 = vmatpush1.msra.mxu0 %v964
        %1224 = vmatprep.subr.mxu0 0.0
        %1225 = vmatpush1.msra.mxu0 %v963
        %1226 = vmatprep.subr.mxu0 0.0
        %1227 = vmatpush1.msra.mxu0 %v962
        %1228 = vmatprep.subr.mxu0 0.0
        %1229 = vmatpush1.msra.mxu0 %v961
        %1230 = vmatprep.subr.mxu0 0.0
        %1231 = vmatpush1.msra.mxu0 %v960
        %1232 = vmatprep.subr.mxu0 0.0
        %1233 = vmatpush1.msra.mxu0 %v959
        %1234 = vmatprep.subr.mxu0 0.0
        %1235 = vmatpush1.msra.mxu0 %v958
        %1236 = vmatprep.subr.mxu0 0.0
        %1237 = vmatpush1.msra.mxu0 %v957
        %1238 = vmatprep.subr.mxu0 0.0
        %1239 = vmatpush1.msra.mxu0 %v956
        %1240 = vmatprep.subr.mxu0 0.0
        %1241 = vmatpush1.msra.mxu0 %v955
        %1242 = vmatprep.subr.mxu0 0.0
        %1243 = vmatpush1.msra.mxu0 %v954
        %1244 = vmatprep.subr.mxu0 0.0
        %1245 = vmatpush1.msra.mxu0 %v953
        %1246 = vmatprep.subr.mxu0 0.0
        %1247 = vmatpush1.msra.mxu0 %v952
        %1248 = vmatprep.subr.mxu0 0.0
        %1249 = vmatpush2.msra.mxu0 %v983
        %1250 = vmatprep.subr.mxu0 0.0
        %1251 = vmatpush2.msra.mxu0 %v982
        %1252 = vmatprep.subr.mxu0 0.0
        %1253 = vmatpush2.msra.mxu0 %v981
        %1254 = vmatprep.subr.mxu0 0.0
        %1255 = vmatpush2.msra.mxu0 %v980
        %1256 = vmatprep.subr.mxu0 0.0
        %1257 = vmatpush2.msra.mxu0 %v979
        %1258 = vmatprep.subr.mxu0 0.0
        %1259 = vmatpush2.msra.mxu0 %v978
        %1260 = vmatprep.subr.mxu0 0.0
        %1261 = vmatpush2.msra.mxu0 %v977
        %1262 = vmatprep.subr.mxu0 0.0
        %1263 = vmatpush2.msra.mxu0 %v976
        %1264 = vmatprep.subr.mxu0 0.0
        %1265 = vmatpush2.msra.mxu0 %v975
        %1266 = vmatprep.subr.mxu0 0.0
        %1267 = vmatpush2.msra.mxu0 %v974
        %1268 = vmatprep.subr.mxu0 0.0
        %1269 = vmatpush2.msra.mxu0 %v973
        %1270 = vmatprep.subr.mxu0 0.0
        %1271 = vmatpush2.msra.mxu0 %v972
        %1272 = vmatprep.subr.mxu0 0.0
        %1273 = vmatpush2.msra.mxu0 %v971
        %1274 = vmatprep.subr.mxu0 0.0
        %1275 = vmatpush2.msra.mxu0 %v970
        %1276 = vmatprep.subr.mxu0 0.0
        %1277 = vmatpush2.msra.mxu0 %v969
        %1278 = vmatprep.subr.mxu0 0.0
        %1279 = vmatpush2.msra.mxu0 %v968
        %1280 = vmatprep.mubr.f32.mxu0 %v839
        %1281 = vmatmul.mubr.f32.gmra.mxu0 %v900
        %v1282 = vpop.f32.mrf.mxu0
        %v1283 = vadd.f32 %v1138, %v1282
        %v1284 = vpop.f32.mrf.mxu0
        %1285 = vmatprep.mubr.f32.mxu0 %v840
        %1286 = vmatmul.mubr.f32.gmra.mxu0 %v901
        %v1287 = vpop.f32.mrf.mxu0
        %v1288 = vadd.f32 %v1143, %v1287
        %v1289 = vpop.f32.mrf.mxu0
        %1290 = vmatprep.mubr.f32.mxu0 %v841
        %1291 = vmatmul.mubr.f32.gmra.mxu0 %v902
        %v1292 = vpop.f32.mrf.mxu0
        %v1293 = vadd.f32 %v1148, %v1292
        %v1294 = vpop.f32.mrf.mxu0
        %1295 = vmatprep.mubr.f32.mxu0 %v842
        %1296 = vmatmul.mubr.f32.gmra.mxu0 %v903
        %v1297 = vpop.f32.mrf.mxu0
        %v1298 = vadd.f32 %v1153, %v1297
        %v1299 = vpop.f32.mrf.mxu0
        %1300 = vmatprep.mubr.f32.mxu0 %v843
        %1301 = vmatmul.mubr.f32.gmra.mxu0 %v904
        %v1302 = vpop.f32.mrf.mxu0
        %v1303 = vadd.f32 %v1158, %v1302
        %v1304 = vpop.f32.mrf.mxu0
        %1305 = vmatprep.mubr.f32.mxu0 %v844
        %1306 = vmatmul.mubr.f32.gmra.mxu0 %v905
        %v1307 = vpop.f32.mrf.mxu0
        %v1308 = vadd.f32 %v1163, %v1307
        %v1309 = vpop.f32.mrf.mxu0
        %1310 = vmatprep.mubr.f32.mxu0 %v845
        %1311 = vmatmul.mubr.f32.gmra.mxu0 %v906
        %v1312 = vpop.f32.mrf.mxu0
        %v1313 = vadd.f32 %v1168, %v1312
        %v1314 = vpop.f32.mrf.mxu0
        %1315 = vmatprep.mubr.f32.mxu0 %v846
        %1316 = vmatmul.mubr.f32.gmra.mxu0 %v907
        %v1317 = vpop.f32.mrf.mxu0
        %v1318 = vadd.f32 %v1173, %v1317
        %v1319 = vpop.f32.mrf.mxu0
        %1320 = vmatprep.mubr.f32.mxu0 %v847
        %1321 = vmatmul.mubr.f32.gmra.mxu0 %v908
        %v1322 = vpop.f32.mrf.mxu0
        %v1323 = vadd.f32 %v1178, %v1322
        %v1324 = vpop.f32.mrf.mxu0
        %1325 = vmatprep.mubr.f32.mxu0 %v848
        %1326 = vmatmul.mubr.f32.gmra.mxu0 %v909
        %v1327 = vpop.f32.mrf.mxu0
        %v1328 = vadd.f32 %v1183, %v1327
        %v1329 = vpop.f32.mrf.mxu0
        %1330 = vmatprep.mubr.f32.mxu0 %v849
        %1331 = vmatmul.mubr.f32.gmra.mxu0 %v910
        %v1332 = vpop.f32.mrf.mxu0
        %v1333 = vadd.f32 %v1188, %v1332
        %v1334 = vpop.f32.mrf.mxu0
        %1335 = vmatprep.mubr.f32.mxu0 %v850
        %1336 = vmatmul.mubr.f32.gmra.mxu0 %v911
        %v1337 = vpop.f32.mrf.mxu0
        %v1338 = vadd.f32 %v1193, %v1337
        %v1339 = vpop.f32.mrf.mxu0
        %1340 = vmatprep.mubr.f32.mxu0 %v851
        %1341 = vmatmul.mubr.f32.gmra.mxu0 %v912
        %v1342 = vpop.f32.mrf.mxu0
        %v1343 = vadd.f32 %v1198, %v1342
        %v1344 = vpop.f32.mrf.mxu0
        %1345 = vmatprep.mubr.f32.mxu0 %v852
        %1346 = vmatmul.mubr.f32.gmra.mxu0 %v913
        %v1347 = vpop.f32.mrf.mxu0
        %v1348 = vadd.f32 %v1203, %v1347
        %v1349 = vpop.f32.mrf.mxu0
        %1350 = vmatprep.mubr.f32.mxu0 %v853
        %1351 = vmatmul.mubr.f32.gmra.mxu0 %v914
        %v1352 = vpop.f32.mrf.mxu0
        %v1353 = vadd.f32 %v1208, %v1352
        %v1354 = vpop.f32.mrf.mxu0
        %1355 = vmatprep.mubr.f32.mxu0 %v854
        %1356 = vmatmul.mubr.f32.gmra.mxu0 %v915
        %v1357 = vpop.f32.mrf.mxu0
        %v1358 = vadd.f32 %v1213, %v1357
        %v1359 = vpop.f32.mrf.mxu0
        %1360 = vdwg.mxu0
        %1361 = vmatprep.subr.mxu0 0.0
        %1362 = vmatpush1.msra.mxu0 %v999
        %1363 = vmatprep.subr.mxu0 0.0
        %1364 = vmatpush1.msra.mxu0 %v998
        %1365 = vmatprep.subr.mxu0 0.0
        %1366 = vmatpush1.msra.mxu0 %v997
        %1367 = vmatprep.subr.mxu0 0.0
        %1368 = vmatpush1.msra.mxu0 %v996
        %1369 = vmatprep.subr.mxu0 0.0
        %1370 = vmatpush1.msra.mxu0 %v995
        %1371 = vmatprep.subr.mxu0 0.0
        %1372 = vmatpush1.msra.mxu0 %v994
        %1373 = vmatprep.subr.mxu0 0.0
        %1374 = vmatpush1.msra.mxu0 %v993
        %1375 = vmatprep.subr.mxu0 0.0
        %1376 = vmatpush1.msra.mxu0 %v992
        %1377 = vmatprep.subr.mxu0 0.0
        %1378 = vmatpush1.msra.mxu0 %v991
        %1379 = vmatprep.subr.mxu0 0.0
        %1380 = vmatpush1.msra.mxu0 %v990
        %1381 = vmatprep.subr.mxu0 0.0
        %1382 = vmatpush1.msra.mxu0 %v989
        %1383 = vmatprep.subr.mxu0 0.0
        %1384 = vmatpush1.msra.mxu0 %v988
        %1385 = vmatprep.subr.mxu0 0.0
        %1386 = vmatpush1.msra.mxu0 %v987
        %1387 = vmatprep.subr.mxu0 0.0
        %1388 = vmatpush1.msra.mxu0 %v986
        %1389 = vmatprep.subr.mxu0 0.0
        %1390 = vmatpush1.msra.mxu0 %v985
        %1391 = vmatprep.subr.mxu0 0.0
        %1392 = vmatpush1.msra.mxu0 %v984
        %1393 = vmatprep.subr.mxu0 0.0
        %1394 = vmatpush2.msra.mxu0 %v1015
        %1395 = vmatprep.subr.mxu0 0.0
        %1396 = vmatpush2.msra.mxu0 %v1014
        %1397 = vmatprep.subr.mxu0 0.0
        %1398 = vmatpush2.msra.mxu0 %v1013
        %1399 = vmatprep.subr.mxu0 0.0
        %1400 = vmatpush2.msra.mxu0 %v1012
        %1401 = vmatprep.subr.mxu0 0.0
        %1402 = vmatpush2.msra.mxu0 %v1011
        %1403 = vmatprep.subr.mxu0 0.0
        %1404 = vmatpush2.msra.mxu0 %v1010
        %1405 = vmatprep.subr.mxu0 0.0
        %1406 = vmatpush2.msra.mxu0 %v1009
        %1407 = vmatprep.subr.mxu0 0.0
        %1408 = vmatpush2.msra.mxu0 %v1008
        %1409 = vmatprep.subr.mxu0 0.0
        %1410 = vmatpush2.msra.mxu0 %v1007
        %1411 = vmatprep.subr.mxu0 0.0
        %1412 = vmatpush2.msra.mxu0 %v1006
        %1413 = vmatprep.subr.mxu0 0.0
        %1414 = vmatpush2.msra.mxu0 %v1005
        %1415 = vmatprep.subr.mxu0 0.0
        %1416 = vmatpush2.msra.mxu0 %v1004
        %1417 = vmatprep.subr.mxu0 0.0
        %1418 = vmatpush2.msra.mxu0 %v1003
        %1419 = vmatprep.subr.mxu0 0.0
        %1420 = vmatpush2.msra.mxu0 %v1002
        %1421 = vmatprep.subr.mxu0 0.0
        %1422 = vmatpush2.msra.mxu0 %v1001
        %1423 = vmatprep.subr.mxu0 0.0
        %1424 = vmatpush2.msra.mxu0 %v1000
        %1425 = vmatprep.mubr.f32.mxu0 %v902
        %1426 = vmatmul.mubr.f32.gmra.mxu0 %v773
        %v1427 = vpop.f32.mrf.mxu0
        %v1428 = vadd.f32 %v1283, %v1427
        %v1429 = vpop.f32.mrf.mxu0
        %1430 = vmatprep.mubr.f32.mxu0 %v903
        %1431 = vmatmul.mubr.f32.gmra.mxu0 %v774
        %v1432 = vpop.f32.mrf.mxu0
        %v1433 = vadd.f32 %v1288, %v1432
        %v1434 = vpop.f32.mrf.mxu0
        %1435 = vmatprep.mubr.f32.mxu0 %v904
        %1436 = vmatmul.mubr.f32.gmra.mxu0 %v775
        %v1437 = vpop.f32.mrf.mxu0
        %v1438 = vadd.f32 %v1293, %v1437
        %v1439 = vpop.f32.mrf.mxu0
        %1440 = vmatprep.mubr.f32.mxu0 %v905
        %1441 = vmatmul.mubr.f32.gmra.mxu0 %v776
        %v1442 = vpop.f32.mrf.mxu0
        %v1443 = vadd.f32 %v1298, %v1442
        %v1444 = vpop.f32.mrf.mxu0
        %1445 = vmatprep.mubr.f32.mxu0 %v906
        %1446 = vmatmul.mubr.f32.gmra.mxu0 %v777
        %v1447 = vpop.f32.mrf.mxu0
        %v1448 = vadd.f32 %v1303, %v1447
        %v1449 = vpop.f32.mrf.mxu0
        %1450 = vmatprep.mubr.f32.mxu0 %v907
        %1451 = vmatmul.mubr.f32.gmra.mxu0 %v778
        %v1452 = vpop.f32.mrf.mxu0
        %v1453 = vadd.f32 %v1308, %v1452
        %v1454 = vpop.f32.mrf.mxu0
        %1455 = vmatprep.mubr.f32.mxu0 %v908
        %1456 = vmatmul.mubr.f32.gmra.mxu0 %v779
        %v1457 = vpop.f32.mrf.mxu0
        %v1458 = vadd.f32 %v1313, %v1457
        %v1459 = vpop.f32.mrf.mxu0
        %1460 = vmatprep.mubr.f32.mxu0 %v909
        %1461 = vmatmul.mubr.f32.gmra.mxu0 %v780
        %v1462 = vpop.f32.mrf.mxu0
        %v1463 = vadd.f32 %v1318, %v1462
        %v1464 = vpop.f32.mrf.mxu0
        %1465 = vmatprep.mubr.f32.mxu0 %v910
        %1466 = vmatmul.mubr.f32.gmra.mxu0 %v781
        %v1467 = vpop.f32.mrf.mxu0
        %v1468 = vadd.f32 %v1323, %v1467
        %v1469 = vpop.f32.mrf.mxu0
        %1470 = vmatprep.mubr.f32.mxu0 %v911
        %1471 = vmatmul.mubr.f32.gmra.mxu0 %v782
        %v1472 = vpop.f32.mrf.mxu0
        %v1473 = vadd.f32 %v1328, %v1472
        %v1474 = vpop.f32.mrf.mxu0
        %1475 = vmatprep.mubr.f32.mxu0 %v912
        %1476 = vmatmul.mubr.f32.gmra.mxu0 %v783
        %v1477 = vpop.f32.mrf.mxu0
        %v1478 = vadd.f32 %v1333, %v1477
        %v1479 = vpop.f32.mrf.mxu0
        %1480 = vmatprep.mubr.f32.mxu0 %v913
        %1481 = vmatmul.mubr.f32.gmra.mxu0 %v784
        %v1482 = vpop.f32.mrf.mxu0
        %v1483 = vadd.f32 %v1338, %v1482
        %v1484 = vpop.f32.mrf.mxu0
        %1485 = vmatprep.mubr.f32.mxu0 %v914
        %1486 = vmatmul.mubr.f32.gmra.mxu0 %v785
        %v1487 = vpop.f32.mrf.mxu0
        %v1488 = vadd.f32 %v1343, %v1487
        %v1489 = vpop.f32.mrf.mxu0
        %1490 = vmatprep.mubr.f32.mxu0 %v915
        %1491 = vmatmul.mubr.f32.gmra.mxu0 %v786
        %v1492 = vpop.f32.mrf.mxu0
        %v1493 = vadd.f32 %v1348, %v1492
        %v1494 = vpop.f32.mrf.mxu0
        %1495 = vmatprep.mubr.f32.mxu0 %v916
        %1496 = vmatmul.mubr.f32.gmra.mxu0 %v787
        %v1497 = vpop.f32.mrf.mxu0
        %v1498 = vadd.f32 %v1353, %v1497
        %v1499 = vpop.f32.mrf.mxu0
        %1500 = vmatprep.mubr.f32.mxu0 %v917
        %1501 = vmatmul.mubr.f32.gmra.mxu0 %v788
        %v1502 = vpop.f32.mrf.mxu0
        %v1503 = vadd.f32 %v1358, %v1502
        %v1504 = vpop.f32.mrf.mxu0
        %1505 = vdwg.mxu0
        %1506 = vmatprep.subr.mxu0 0.0
        %1507 = vmatpush1.msra.mxu0 %v1031
        %1508 = vmatprep.subr.mxu0 0.0
        %1509 = vmatpush1.msra.mxu0 %v1030
        %1510 = vmatprep.subr.mxu0 0.0
        %1511 = vmatpush1.msra.mxu0 %v1029
        %1512 = vmatprep.subr.mxu0 0.0
        %1513 = vmatpush1.msra.mxu0 %v1028
        %1514 = vmatprep.subr.mxu0 0.0
        %1515 = vmatpush1.msra.mxu0 %v1027
        %1516 = vmatprep.subr.mxu0 0.0
        %1517 = vmatpush1.msra.mxu0 %v1026
        %1518 = vmatprep.subr.mxu0 0.0
        %1519 = vmatpush1.msra.mxu0 %v1025
        %1520 = vmatprep.subr.mxu0 0.0
        %1521 = vmatpush1.msra.mxu0 %v1024
        %1522 = vmatprep.subr.mxu0 0.0
        %1523 = vmatpush1.msra.mxu0 %v1023
        %1524 = vmatprep.subr.mxu0 0.0
        %1525 = vmatpush1.msra.mxu0 %v1022
        %1526 = vmatprep.subr.mxu0 0.0
        %1527 = vmatpush1.msra.mxu0 %v1021
        %1528 = vmatprep.subr.mxu0 0.0
        %1529 = vmatpush1.msra.mxu0 %v1020
        %1530 = vmatprep.subr.mxu0 0.0
        %1531 = vmatpush1.msra.mxu0 %v1019
        %1532 = vmatprep.subr.mxu0 0.0
        %1533 = vmatpush1.msra.mxu0 %v1018
        %1534 = vmatprep.subr.mxu0 0.0
        %1535 = vmatpush1.msra.mxu0 %v1017
        %1536 = vmatprep.subr.mxu0 0.0
        %1537 = vmatpush1.msra.mxu0 %v1016
        %1538 = vmatprep.subr.mxu0 0.0
        %1539 = vmatpush2.msra.mxu0 %v1047
        %1540 = vmatprep.subr.mxu0 0.0
        %1541 = vmatpush2.msra.mxu0 %v1046
        %1542 = vmatprep.subr.mxu0 0.0
        %1543 = vmatpush2.msra.mxu0 %v1045
        %1544 = vmatprep.subr.mxu0 0.0
        %1545 = vmatpush2.msra.mxu0 %v1044
        %1546 = vmatprep.subr.mxu0 0.0
        %1547 = vmatpush2.msra.mxu0 %v1043
        %1548 = vmatprep.subr.mxu0 0.0
        %1549 = vmatpush2.msra.mxu0 %v1042
        %1550 = vmatprep.subr.mxu0 0.0
        %1551 = vmatpush2.msra.mxu0 %v1041
        %1552 = vmatprep.subr.mxu0 0.0
        %1553 = vmatpush2.msra.mxu0 %v1040
        %1554 = vmatprep.subr.mxu0 0.0
        %1555 = vmatpush2.msra.mxu0 %v1039
        %1556 = vmatprep.subr.mxu0 0.0
        %1557 = vmatpush2.msra.mxu0 %v1038
        %1558 = vmatprep.subr.mxu0 0.0
        %1559 = vmatpush2.msra.mxu0 %v1037
        %1560 = vmatprep.subr.mxu0 0.0
        %1561 = vmatpush2.msra.mxu0 %v1036
        %1562 = vmatprep.subr.mxu0 0.0
        %1563 = vmatpush2.msra.mxu0 %v1035
        %1564 = vmatprep.subr.mxu0 0.0
        %1565 = vmatpush2.msra.mxu0 %v1034
        %1566 = vmatprep.subr.mxu0 0.0
        %1567 = vmatpush2.msra.mxu0 %v1033
        %1568 = vmatprep.subr.mxu0 0.0
        %1569 = vmatpush2.msra.mxu0 %v1032
        %1570 = vmatprep.mubr.f32.mxu0 %v775
        %1571 = vmatmul.mubr.f32.gmra.mxu0 %v841
        %v1572 = vpop.f32.mrf.mxu0
        %v1573 = vadd.f32 %v1428, %v1572
        %v1574 = vpop.f32.mrf.mxu0
        %1575 = vmatprep.mubr.f32.mxu0 %v776
        %1576 = vmatmul.mubr.f32.gmra.mxu0 %v842
        %v1577 = vpop.f32.mrf.mxu0
        %v1578 = vadd.f32 %v1433, %v1577
        %v1579 = vpop.f32.mrf.mxu0
        %1580 = vmatprep.mubr.f32.mxu0 %v777
        %1581 = vmatmul.mubr.f32.gmra.mxu0 %v843
        %v1582 = vpop.f32.mrf.mxu0
        %v1583 = vadd.f32 %v1438, %v1582
        %v1584 = vpop.f32.mrf.mxu0
        %1585 = vmatprep.mubr.f32.mxu0 %v778
        %1586 = vmatmul.mubr.f32.gmra.mxu0 %v844
        %v1587 = vpop.f32.mrf.mxu0
        %v1588 = vadd.f32 %v1443, %v1587
        %v1589 = vpop.f32.mrf.mxu0
        %1590 = vmatprep.mubr.f32.mxu0 %v779
        %1591 = vmatmul.mubr.f32.gmra.mxu0 %v845
        %v1592 = vpop.f32.mrf.mxu0
        %v1593 = vadd.f32 %v1448, %v1592
        %v1594 = vpop.f32.mrf.mxu0
        %1595 = vmatprep.mubr.f32.mxu0 %v780
        %1596 = vmatmul.mubr.f32.gmra.mxu0 %v846
        %v1597 = vpop.f32.mrf.mxu0
        %v1598 = vadd.f32 %v1453, %v1597
        %v1599 = vpop.f32.mrf.mxu0
        %1600 = vmatprep.mubr.f32.mxu0 %v781
        %1601 = vmatmul.mubr.f32.gmra.mxu0 %v847
        %v1602 = vpop.f32.mrf.mxu0
        %v1603 = vadd.f32 %v1458, %v1602
        %v1604 = vpop.f32.mrf.mxu0
        %1605 = vmatprep.mubr.f32.mxu0 %v782
        %1606 = vmatmul.mubr.f32.gmra.mxu0 %v848
        %v1607 = vpop.f32.mrf.mxu0
        %v1608 = vadd.f32 %v1463, %v1607
        %v1609 = vpop.f32.mrf.mxu0
        %1610 = vmatprep.mubr.f32.mxu0 %v783
        %1611 = vmatmul.mubr.f32.gmra.mxu0 %v849
        %v1612 = vpop.f32.mrf.mxu0
        %v1613 = vadd.f32 %v1468, %v1612
        %v1614 = vpop.f32.mrf.mxu0
        %1615 = vmatprep.mubr.f32.mxu0 %v784
        %1616 = vmatmul.mubr.f32.gmra.mxu0 %v850
        %v1617 = vpop.f32.mrf.mxu0
        %v1618 = vadd.f32 %v1473, %v1617
        %v1619 = vpop.f32.mrf.mxu0
        %1620 = vmatprep.mubr.f32.mxu0 %v785
        %1621 = vmatmul.mubr.f32.gmra.mxu0 %v851
        %v1622 = vpop.f32.mrf.mxu0
        %v1623 = vadd.f32 %v1478, %v1622
        %v1624 = vpop.f32.mrf.mxu0
        %1625 = vmatprep.mubr.f32.mxu0 %v786
        %1626 = vmatmul.mubr.f32.gmra.mxu0 %v852
        %v1627 = vpop.f32.mrf.mxu0
        %v1628 = vadd.f32 %v1483, %v1627
        %v1629 = vpop.f32.mrf.mxu0
        %1630 = vmatprep.mubr.f32.mxu0 %v787
        %1631 = vmatmul.mubr.f32.gmra.mxu0 %v853
        %v1632 = vpop.f32.mrf.mxu0
        %v1633 = vadd.f32 %v1488, %v1632
        %v1634 = vpop.f32.mrf.mxu0
        %1635 = vmatprep.mubr.f32.mxu0 %v788
        %1636 = vmatmul.mubr.f32.gmra.mxu0 %v854
        %v1637 = vpop.f32.mrf.mxu0
        %v1638 = vadd.f32 %v1493, %v1637
        %v1639 = vpop.f32.mrf.mxu0
        %1640 = vmatprep.mubr.f32.mxu0 %v789
        %1641 = vmatmul.mubr.f32.gmra.mxu0 %v855
        %v1642 = vpop.f32.mrf.mxu0
        %v1643 = vadd.f32 %v1498, %v1642
        %v1644 = vpop.f32.mrf.mxu0
        %1645 = vmatprep.mubr.f32.mxu0 %v790
        %1646 = vmatmul.mubr.f32.gmra.mxu0 %v856
        %v1647 = vpop.f32.mrf.mxu0
        %v1648 = vadd.f32 %v1503, %v1647
        %v1649 = vpop.f32.mrf.mxu0
        %1650 = vdwg.mxu0
        %1651 = vmatprep.subr.mxu0 0.0
        %1652 = vmatpush1.msra.mxu0 %v1063
        %1653 = vmatprep.subr.mxu0 0.0
        %1654 = vmatpush1.msra.mxu0 %v1062
        %1655 = vmatprep.subr.mxu0 0.0
        %1656 = vmatpush1.msra.mxu0 %v1061
        %1657 = vmatprep.subr.mxu0 0.0
        %1658 = vmatpush1.msra.mxu0 %v1060
        %1659 = vmatprep.subr.mxu0 0.0
        %1660 = vmatpush1.msra.mxu0 %v1059
        %1661 = vmatprep.subr.mxu0 0.0
        %1662 = vmatpush1.msra.mxu0 %v1058
        %1663 = vmatprep.subr.mxu0 0.0
        %1664 = vmatpush1.msra.mxu0 %v1057
        %1665 = vmatprep.subr.mxu0 0.0
        %1666 = vmatpush1.msra.mxu0 %v1056
        %1667 = vmatprep.subr.mxu0 0.0
        %1668 = vmatpush1.msra.mxu0 %v1055
        %1669 = vmatprep.subr.mxu0 0.0
        %1670 = vmatpush1.msra.mxu0 %v1054
        %1671 = vmatprep.subr.mxu0 0.0
        %1672 = vmatpush1.msra.mxu0 %v1053
        %1673 = vmatprep.subr.mxu0 0.0
        %1674 = vmatpush1.msra.mxu0 %v1052
        %1675 = vmatprep.subr.mxu0 0.0
        %1676 = vmatpush1.msra.mxu0 %v1051
        %1677 = vmatprep.subr.mxu0 0.0
        %1678 = vmatpush1.msra.mxu0 %v1050
        %1679 = vmatprep.subr.mxu0 0.0
        %1680 = vmatpush1.msra.mxu0 %v1049
        %1681 = vmatprep.subr.mxu0 0.0
        %1682 = vmatpush1.msra.mxu0 %v1048
        %1683 = vmatprep.subr.mxu0 0.0
        %1684 = vmatpush2.msra.mxu0 0.0
        %1685 = vmatprep.subr.mxu0 0.0
        %1686 = vmatpush2.msra.mxu0 0.0
        %1687 = vmatprep.subr.mxu0 0.0
        %1688 = vmatpush2.msra.mxu0 0.0
        %1689 = vmatprep.subr.mxu0 0.0
        %1690 = vmatpush2.msra.mxu0 0.0
        %1691 = vmatprep.subr.mxu0 0.0
        %1692 = vmatpush2.msra.mxu0 0.0
        %1693 = vmatprep.subr.mxu0 0.0
        %1694 = vmatpush2.msra.mxu0 0.0
        %1695 = vmatprep.subr.mxu0 0.0
        %1696 = vmatpush2.msra.mxu0 0.0
        %1697 = vmatprep.subr.mxu0 0.0
        %1698 = vmatpush2.msra.mxu0 0.0
        %1699 = vmatprep.subr.mxu0 0.0
        %1700 = vmatpush2.msra.mxu0 0.0
        %1701 = vmatprep.subr.mxu0 0.0
        %1702 = vmatpush2.msra.mxu0 0.0
        %1703 = vmatprep.subr.mxu0 0.0
        %1704 = vmatpush2.msra.mxu0 0.0
        %1705 = vmatprep.subr.mxu0 0.0
        %1706 = vmatpush2.msra.mxu0 0.0
        %1707 = vmatprep.subr.mxu0 0.0
        %1708 = vmatpush2.msra.mxu0 0.0
        %1709 = vmatprep.subr.mxu0 0.0
        %1710 = vmatpush2.msra.mxu0 0.0
        %1711 = vmatprep.subr.mxu0 0.0
        %1712 = vmatpush2.msra.mxu0 0.0
        %1713 = vmatprep.subr.mxu0 0.0
        %1714 = vmatpush2.msra.mxu0 0.0
        %1715 = vmatprep.mubr.f32.mxu0 0.0
        %1716 = vmatmul.mubr.f32.gmra.mxu0 %v904
        %v1717 = vpop.f32.mrf.mxu0
        %v1718 = vadd.f32 %v1573, %v1717
        %v1719 = vpop.f32.mrf.mxu0
        %1720 = vmatprep.mubr.f32.mxu0 0.0
        %1721 = vmatmul.mubr.f32.gmra.mxu0 %v905
        %v1722 = vpop.f32.mrf.mxu0
        %v1723 = vadd.f32 %v1578, %v1722
        %v1724 = vpop.f32.mrf.mxu0
        %1725 = vmatprep.mubr.f32.mxu0 0.0
        %1726 = vmatmul.mubr.f32.gmra.mxu0 %v906
        %v1727 = vpop.f32.mrf.mxu0
        %v1728 = vadd.f32 %v1583, %v1727
        %v1729 = vpop.f32.mrf.mxu0
        %1730 = vmatprep.mubr.f32.mxu0 0.0
        %1731 = vmatmul.mubr.f32.gmra.mxu0 %v907
        %v1732 = vpop.f32.mrf.mxu0
        %v1733 = vadd.f32 %v1588, %v1732
        %v1734 = vpop.f32.mrf.mxu0
        %1735 = vmatprep.mubr.f32.mxu0 0.0
        %1736 = vmatmul.mubr.f32.gmra.mxu0 %v908
        %v1737 = vpop.f32.mrf.mxu0
        %v1738 = vadd.f32 %v1593, %v1737
        %v1739 = vpop.f32.mrf.mxu0
        %1740 = vmatprep.mubr.f32.mxu0 0.0
        %1741 = vmatmul.mubr.f32.gmra.mxu0 %v909
        %v1742 = vpop.f32.mrf.mxu0
        %v1743 = vadd.f32 %v1598, %v1742
        %v1744 = vpop.f32.mrf.mxu0
        %1745 = vmatprep.mubr.f32.mxu0 0.0
        %1746 = vmatmul.mubr.f32.gmra.mxu0 %v910
        %v1747 = vpop.f32.mrf.mxu0
        %v1748 = vadd.f32 %v1603, %v1747
        %v1749 = vpop.f32.mrf.mxu0
        %1750 = vmatprep.mubr.f32.mxu0 0.0
        %1751 = vmatmul.mubr.f32.gmra.mxu0 %v911
        %v1752 = vpop.f32.mrf.mxu0
        %v1753 = vadd.f32 %v1608, %v1752
        %v1754 = vpop.f32.mrf.mxu0
        %1755 = vmatprep.mubr.f32.mxu0 0.0
        %1756 = vmatmul.mubr.f32.gmra.mxu0 %v912
        %v1757 = vpop.f32.mrf.mxu0
        %v1758 = vadd.f32 %v1613, %v1757
        %v1759 = vpop.f32.mrf.mxu0
        %1760 = vmatprep.mubr.f32.mxu0 0.0
        %1761 = vmatmul.mubr.f32.gmra.mxu0 %v913
        %v1762 = vpop.f32.mrf.mxu0
        %v1763 = vadd.f32 %v1618, %v1762
        %v1764 = vpop.f32.mrf.mxu0
        %1765 = vmatprep.mubr.f32.mxu0 0.0
        %1766 = vmatmul.mubr.f32.gmra.mxu0 %v914
        %v1767 = vpop.f32.mrf.mxu0
        %v1768 = vadd.f32 %v1623, %v1767
        %v1769 = vpop.f32.mrf.mxu0
        %1770 = vmatprep.mubr.f32.mxu0 0.0
        %1771 = vmatmul.mubr.f32.gmra.mxu0 %v915
        %v1772 = vpop.f32.mrf.mxu0
        %v1773 = vadd.f32 %v1628, %v1772
        %v1774 = vpop.f32.mrf.mxu0
        %1775 = vmatprep.mubr.f32.mxu0 0.0
        %1776 = vmatmul.mubr.f32.gmra.mxu0 %v916
        %v1777 = vpop.f32.mrf.mxu0
        %v1778 = vadd.f32 %v1633, %v1777
        %v1779 = vpop.f32.mrf.mxu0
        %1780 = vmatprep.mubr.f32.mxu0 0.0
        %1781 = vmatmul.mubr.f32.gmra.mxu0 %v917
        %v1782 = vpop.f32.mrf.mxu0
        %v1783 = vadd.f32 %v1638, %v1782
        %v1784 = vpop.f32.mrf.mxu0
        %1785 = vmatprep.mubr.f32.mxu0 0.0
        %1786 = vmatmul.mubr.f32.gmra.mxu0 %v918
        %v1787 = vpop.f32.mrf.mxu0
        %v1788 = vadd.f32 %v1643, %v1787
        %v1789 = vpop.f32.mrf.mxu0
        %1790 = vmatprep.mubr.f32.mxu0 0.0
        %1791 = vmatmul.mubr.f32.gmra.mxu0 %v919
        %v1792 = vpop.f32.mrf.mxu0
        %v1793 = vadd.f32 %v1648, %v1792
        %v1794 = vpop.f32.mrf.mxu0
        %1795 = vdwg.mxu0
        %v1796 = vmax.f32 %v1718, 0.0
        %v1797 = vmax.f32 %v1723, 0.0
        %v1798 = vmax.f32 %v1728, 0.0
        %v1799 = vmax.f32 %v1733, 0.0
        %v1800 = vmax.f32 %v1738, 0.0
        %v1801 = vmax.f32 %v1743, 0.0
        %v1802 = vmax.f32 %v1748, 0.0
        %v1803 = vmax.f32 %v1753, 0.0
        %v1804 = vmax.f32 %v1758, 0.0
        %v1805 = vmax.f32 %v1763, 0.0
        %v1806 = vmax.f32 %v1768, 0.0
        %v1807 = vmax.f32 %v1773, 0.0
        %v1808 = vmax.f32 %v1778, 0.0
        %v1809 = vmax.f32 %v1783, 0.0
        %v1810 = vmax.f32 %v1788, 0.0
        %v1811 = vmax.f32 %v1793, 0.0
        %v1812 = vld [vmem:[#allocation11] sm:$0xff]
        %v1813 = vld [vmem:[#allocation11 + $0x8] sm:$0xff]
        %v1814 = vld [vmem:[#allocation11 + $0x10] sm:$0xff]
        %v1815 = vld [vmem:[#allocation11 + $0x18] sm:$0xff]
        %v1816 = vld [vmem:[#allocation11 + $0x20] sm:$0xff]
        %v1817 = vld [vmem:[#allocation11 + $0x28] sm:$0xff]
        %v1818 = vld [vmem:[#allocation11 + $0x30] sm:$0xff]
        %v1819 = vld [vmem:[#allocation11 + $0x38] sm:$0xff]
        %v1820 = vld [vmem:[#allocation11 + $0x40] sm:$0xff]
        %v1821 = vld [vmem:[#allocation11 + $0x48] sm:$0xff]
        %v1822 = vld [vmem:[#allocation11 + $0x50] sm:$0xff]
        %v1823 = vld [vmem:[#allocation11 + $0x58] sm:$0xff]
        %v1824 = vld [vmem:[#allocation11 + $0x60] sm:$0xff]
        %v1825 = vld [vmem:[#allocation11 + $0x68] sm:$0xff]
        %v1826 = vld [vmem:[#allocation11 + $0x70] sm:$0xff]
        %v1827 = vld [vmem:[#allocation11 + $0x78] sm:$0xff]
        %v1828 = vld [vmem:[%s7] sm:$0x1]
        %v1830 = vlaneseq
        %v1831 = vshrl.u32 %v1830, 7
        %v1832 = vsub.s32 0, %v1831
        %v1833 = vrot.slane %v1828, %v1832
        %1835 = vmatprep.subr.mxu0 0.0
        %1836 = vmatpush1.msra.mxu0 %v1827
        %1837 = vmatprep.subr.mxu0 0.0
        %1838 = vmatpush1.msra.mxu0 %v1826
        %1839 = vmatprep.subr.mxu0 0.0
        %1840 = vmatpush1.msra.mxu0 %v1825
        %1841 = vmatprep.subr.mxu0 0.0
        %1842 = vmatpush1.msra.mxu0 %v1824
        %1843 = vmatprep.subr.mxu0 0.0
        %1844 = vmatpush1.msra.mxu0 %v1823
        %1845 = vmatprep.subr.mxu0 0.0
        %1846 = vmatpush1.msra.mxu0 %v1822
        %1847 = vmatprep.subr.mxu0 0.0
        %1848 = vmatpush1.msra.mxu0 %v1821
        %1849 = vmatprep.subr.mxu0 0.0
        %1850 = vmatpush1.msra.mxu0 %v1820
        %1851 = vmatprep.subr.mxu0 0.0
        %1852 = vmatpush1.msra.mxu0 %v1819
        %1853 = vmatprep.subr.mxu0 0.0
        %1854 = vmatpush1.msra.mxu0 %v1818
        %1855 = vmatprep.subr.mxu0 0.0
        %1856 = vmatpush1.msra.mxu0 %v1817
        %1857 = vmatprep.subr.mxu0 0.0
        %1858 = vmatpush1.msra.mxu0 %v1816
        %1859 = vmatprep.subr.mxu0 0.0
        %1860 = vmatpush1.msra.mxu0 %v1815
        %1861 = vmatprep.subr.mxu0 0.0
        %1862 = vmatpush1.msra.mxu0 %v1814
        %1863 = vmatprep.subr.mxu0 0.0
        %1864 = vmatpush1.msra.mxu0 %v1813
        %1865 = vmatprep.subr.mxu0 0.0
        %1866 = vmatpush1.msra.mxu0 %v1812
        %1867 = vmatprep.subr.mxu0 0.0
        %1868 = vmatpush2.msra.mxu0 0.0
        %1869 = vmatprep.subr.mxu0 0.0
        %1870 = vmatpush2.msra.mxu0 0.0
        %1871 = vmatprep.subr.mxu0 0.0
        %1872 = vmatpush2.msra.mxu0 0.0
        %1873 = vmatprep.subr.mxu0 0.0
        %1874 = vmatpush2.msra.mxu0 0.0
        %1875 = vmatprep.subr.mxu0 0.0
        %1876 = vmatpush2.msra.mxu0 0.0
        %1877 = vmatprep.subr.mxu0 0.0
        %1878 = vmatpush2.msra.mxu0 0.0
        %1879 = vmatprep.subr.mxu0 0.0
        %1880 = vmatpush2.msra.mxu0 0.0
        %1881 = vmatprep.subr.mxu0 0.0
        %1882 = vmatpush2.msra.mxu0 0.0
        %1883 = vmatprep.subr.mxu0 0.0
        %1884 = vmatpush2.msra.mxu0 0.0
        %1885 = vmatprep.subr.mxu0 0.0
        %1886 = vmatpush2.msra.mxu0 0.0
        %1887 = vmatprep.subr.mxu0 0.0
        %1888 = vmatpush2.msra.mxu0 0.0
        %1889 = vmatprep.subr.mxu0 0.0
        %1890 = vmatpush2.msra.mxu0 0.0
        %1891 = vmatprep.subr.mxu0 0.0
        %1892 = vmatpush2.msra.mxu0 0.0
        %1893 = vmatprep.subr.mxu0 0.0
        %1894 = vmatpush2.msra.mxu0 0.0
        %1895 = vmatprep.subr.mxu0 0.0
        %1896 = vmatpush2.msra.mxu0 0.0
        %1897 = vmatprep.subr.mxu0 0.0
        %1898 = vmatpush2.msra.mxu0 0.0
        %1899 = vmatprep.mubr.f32.mxu0 0.0
        %1900 = vmatmul.mubr.f32.gmra.mxu0 %v1796
        %v1901 = vpop.f32.mrf.mxu0
        %v1902 = vadd.f32 %v1833, %v1901
        %v1903 = vpop.f32.mrf.mxu0
        %1904 = vmatprep.mubr.f32.mxu0 0.0
        %1905 = vmatmul.mubr.f32.gmra.mxu0 %v1797
        %v1906 = vpop.f32.mrf.mxu0
        %v1907 = vadd.f32 %v1833, %v1906
        %v1908 = vpop.f32.mrf.mxu0
        %1909 = vmatprep.mubr.f32.mxu0 0.0
        %1910 = vmatmul.mubr.f32.gmra.mxu0 %v1798
        %v1911 = vpop.f32.mrf.mxu0
        %v1912 = vadd.f32 %v1833, %v1911
        %v1913 = vpop.f32.mrf.mxu0
        %1914 = vmatprep.mubr.f32.mxu0 0.0
        %1915 = vmatmul.mubr.f32.gmra.mxu0 %v1799
        %v1916 = vpop.f32.mrf.mxu0
        %v1917 = vadd.f32 %v1833, %v1916
        %v1918 = vpop.f32.mrf.mxu0
        %1919 = vmatprep.mubr.f32.mxu0 0.0
        %1920 = vmatmul.mubr.f32.gmra.mxu0 %v1800
        %v1921 = vpop.f32.mrf.mxu0
        %v1922 = vadd.f32 %v1833, %v1921
        %v1923 = vpop.f32.mrf.mxu0
        %1924 = vmatprep.mubr.f32.mxu0 0.0
        %1925 = vmatmul.mubr.f32.gmra.mxu0 %v1801
        %v1926 = vpop.f32.mrf.mxu0
        %v1927 = vadd.f32 %v1833, %v1926
        %v1928 = vpop.f32.mrf.mxu0
        %1929 = vmatprep.mubr.f32.mxu0 0.0
        %1930 = vmatmul.mubr.f32.gmra.mxu0 %v1802
        %v1931 = vpop.f32.mrf.mxu0
        %v1932 = vadd.f32 %v1833, %v1931
        %v1933 = vpop.f32.mrf.mxu0
        %1934 = vmatprep.mubr.f32.mxu0 0.0
        %1935 = vmatmul.mubr.f32.gmra.mxu0 %v1803
        %v1936 = vpop.f32.mrf.mxu0
        %v1937 = vadd.f32 %v1833, %v1936
        %v1938 = vpop.f32.mrf.mxu0
        %1939 = vmatprep.mubr.f32.mxu0 0.0
        %1940 = vmatmul.mubr.f32.gmra.mxu0 %v1804
        %v1941 = vpop.f32.mrf.mxu0
        %v1942 = vadd.f32 %v1833, %v1941
        %v1943 = vpop.f32.mrf.mxu0
        %1944 = vmatprep.mubr.f32.mxu0 0.0
        %1945 = vmatmul.mubr.f32.gmra.mxu0 %v1805
        %v1946 = vpop.f32.mrf.mxu0
        %v1947 = vadd.f32 %v1833, %v1946
        %v1948 = vpop.f32.mrf.mxu0
        %1949 = vmatprep.mubr.f32.mxu0 0.0
        %1950 = vmatmul.mubr.f32.gmra.mxu0 %v1806
        %v1951 = vpop.f32.mrf.mxu0
        %v1952 = vadd.f32 %v1833, %v1951
        %v1953 = vpop.f32.mrf.mxu0
        %1954 = vmatprep.mubr.f32.mxu0 0.0
        %1955 = vmatmul.mubr.f32.gmra.mxu0 %v1807
        %v1956 = vpop.f32.mrf.mxu0
        %v1957 = vadd.f32 %v1833, %v1956
        %v1958 = vpop.f32.mrf.mxu0
        %1959 = vmatprep.mubr.f32.mxu0 0.0
        %1960 = vmatmul.mubr.f32.gmra.mxu0 %v1808
        %v1961 = vpop.f32.mrf.mxu0
        %v1962 = vadd.f32 %v1833, %v1961
        %v1963 = vpop.f32.mrf.mxu0
        %1964 = vmatprep.mubr.f32.mxu0 0.0
        %1965 = vmatmul.mubr.f32.gmra.mxu0 %v1809
        %v1966 = vpop.f32.mrf.mxu0
        %v1967 = vadd.f32 %v1833, %v1966
        %v1968 = vpop.f32.mrf.mxu0
        %1969 = vmatprep.mubr.f32.mxu0 0.0
        %1970 = vmatmul.mubr.f32.gmra.mxu0 %v1810
        %v1971 = vpop.f32.mrf.mxu0
        %v1972 = vadd.f32 %v1833, %v1971
        %v1973 = vpop.f32.mrf.mxu0
        %1974 = vmatprep.mubr.f32.mxu0 0.0
        %1975 = vmatmul.mubr.f32.gmra.mxu0 %v1811
        %v1976 = vpop.f32.mrf.mxu0
        %v1977 = vadd.f32 %v1833, %v1976
        %v1978 = vpop.f32.mrf.mxu0
        %1979 = vdwg.mxu0
        %v1980 = vadd.f32 %v1902, %v408
        %v1981 = vadd.f32 %v1907, %v409
        %v1982 = vadd.f32 %v1912, %v410
        %v1983 = vadd.f32 %v1917, %v411
        %v1984 = vadd.f32 %v1922, %v412
        %v1985 = vadd.f32 %v1927, %v413
        %v1986 = vadd.f32 %v1932, %v414
        %v1987 = vadd.f32 %v1937, %v415
        %v1988 = vadd.f32 %v1942, %v416
        %v1989 = vadd.f32 %v1947, %v417
        %v1990 = vadd.f32 %v1952, %v418
        %v1991 = vadd.f32 %v1957, %v419
        %v1992 = vadd.f32 %v1962, %v420
        %v1993 = vadd.f32 %v1967, %v421
        %v1994 = vadd.f32 %v1972, %v422
        %v1995 = vadd.f32 %v1977, %v423
        %v1996 = vmax.f32 %v1980, 0.0
        %v1997 = vmax.f32 %v1981, 0.0
        %v1998 = vmax.f32 %v1982, 0.0
        %v1999 = vmax.f32 %v1983, 0.0
        %v2000 = vmax.f32 %v1984, 0.0
        %v2001 = vmax.f32 %v1985, 0.0
        %v2002 = vmax.f32 %v1986, 0.0
        %v2003 = vmax.f32 %v1987, 0.0
        %v2004 = vmax.f32 %v1988, 0.0
        %v2005 = vmax.f32 %v1989, 0.0
        %v2006 = vmax.f32 %v1990, 0.0
        %v2007 = vmax.f32 %v1991, 0.0
        %v2008 = vmax.f32 %v1992, 0.0
        %v2009 = vmax.f32 %v1993, 0.0
        %v2010 = vmax.f32 %v1994, 0.0
        %v2011 = vmax.f32 %v1995, 0.0
        %2012 = vst [vmem:[%s360] sm:$0xff] %v1996
        %2013 = vst [vmem:[%s360 + $0x8] sm:$0xff] %v1997
        %2014 = vst [vmem:[%s360 + $0x10] sm:$0xff] %v1998
        %2015 = vst [vmem:[%s360 + $0x18] sm:$0xff] %v1999
        %2016 = vst [vmem:[%s360 + $0x20] sm:$0xff] %v2000
        %2017 = vst [vmem:[%s360 + $0x28] sm:$0xff] %v2001
        %2018 = vst [vmem:[%s360 + $0x30] sm:$0xff] %v2002
        %2019 = vst [vmem:[%s360 + $0x38] sm:$0xff] %v2003
        %2020 = vst [vmem:[%s360 + $0x40] sm:$0xff] %v2004
        %2021 = vst [vmem:[%s360 + $0x48] sm:$0xff] %v2005
        %2022 = vst [vmem:[%s360 + $0x50] sm:$0xff] %v2006
        %2023 = vst [vmem:[%s360 + $0x58] sm:$0xff] %v2007
        %2024 = vst [vmem:[%s360 + $0x60] sm:$0xff] %v2008
        %2025 = vst [vmem:[%s360 + $0x68] sm:$0xff] %v2009
        %2026 = vst [vmem:[%s360 + $0x70] sm:$0xff] %v2010
        %2027 = vst [vmem:[%s360 + $0x78] sm:$0xff] %v2011
        %s2028 = sand.u32 %s203, 1
        %s2029 = scalar_lea.sflag [#allocation7], %s2028
        %s2030 = sand.u32 %s203, 1
        %s2031 = smul.addr %s2030, 128
        %s2032 = scalar_lea.vmem [#allocation13], %s2031
        // Predicated region
        $region97: #{tpu_custom_call.1} parent=47 // pred_check
          %p2033 = pneg %p213
        $region98: #{tpu_custom_call.1} parent=47 // pred_check_branch
          %2035 = sbr.rel (%p2033) target = $region100
        $region99: #{tpu_custom_call.1} parent=47 // pred_region
          %s2036 = smul.u32 8, %s32
          %s2038 = ssub.s32 2048, 2048
          %2039 = vsyncadd %s2029, %s2038
          %s2040 = smul.addr %s2036, 2
          %s2041 = smul.addr %s31, 32
          %s2042 = sadd.s32 %s2040, %s2041
          %s2043 = smul.addr %s2042, 128
          %s2044 = scalar_lea.hbm %s8, %s2043
          %s2045 = sshll.u32 %s2032, 4
          %s2046 = int_to_ptr.vmem [resolvable:$true] %s2045
          %2051 = dma.vmem_to_hbm [thread:$0]  %s2046, 2048, %s2044, %s2029, 128, 128, 8
        $region100: #{tpu_custom_call.1} parent=47 // pred_fallthru
          _
      $region48: #{tpu_custom_call.1} parent=5 // pred_fallthru
        _
      %p2052 = scmp.le.s32.totalorder 2, %s22
      // Predicated region
      $region101: #{tpu_custom_call.1} parent=5 // pred_check
        %p2053 = pneg %p2052
      $region102: #{tpu_custom_call.1} parent=5 // pred_check_branch
        %2055 = sbr.rel (%p2053) target = $region104
      $region103: #{tpu_custom_call.1} parent=5 // pred_region
        %s2056 = ssub.s32 %s22, 2
        // Predicated region
        $region105: #{tpu_custom_call.1} parent=103 // pred_check
          %p2057 = pneg %p219
        $region106: #{tpu_custom_call.1} parent=103 // pred_check_branch
          %2059 = sbr.rel (%p2057) target = $region108
        $region107: #{tpu_custom_call.1} parent=103 // pred_region
          %s2060 = sand.u32 %s204, 1
          %s2061 = scalar_lea.sflag [#allocation7], %s2060
          %s2062 = sand.u32 %s204, 1
          %s2063 = smul.addr %s2062, 128
          %s2064 = scalar_lea.vmem [#allocation13], %s2063
          %2065 = dma.done %s2061, 2048
        $region108: #{tpu_custom_call.1} parent=103 // pred_fallthru
          _
      $region104: #{tpu_custom_call.1} parent=5 // pred_fallthru
        _
    $region6: #{tpu_custom_call.1} parent=1 // loop_footer
      %s26 = sadd.s32 1, %s22
    $region7: #{tpu_custom_call.1} parent=1 // loop_footer_branch
      %21 = sbr.rel target = $region3
    $region8: #{tpu_custom_call.1} parent=1 // loop_exit
      _
    %2066 = vsyncpa [#allocation6], 1
    %s2067 = scalar_lea.sflag [#allocation6], 1
    %2068 = vsyncpa %s2067, 1
    %2069 = vsyncpa [#allocation9], 1
    %2070 = vsyncpa [#allocation12], 1
    %2071 = vsyncpa [#allocation7], 1
    %s2072 = scalar_lea.sflag [#allocation7], 1
    %2073 = vsyncpa %s2072, 1
  %2074 = vsyncmov [#allocation4]
  %s2075 = vpop.sfrf %2074
  %p2076 = scmp.eq.s32.totalorder %s2075, 0
  %p2077 = pneg %p2076
  %2079 = shalt.err (%p2077)
  %s2080 = scalar_lea.sflag [#allocation4], 1
  %2081 = vsyncmov %s2080
  %s2082 = vpop.sfrf %2081
  %p2083 = scmp.eq.s32.totalorder %s2082, 0
  %p2084 = pneg %p2083
  %2086 = shalt.err (%p2084)

</llo_original>
